<compile_context>
chip_gen: v5e
topology: v5e:2x2
jax: 0.10.0
libtpu: 0.0.40
codegen_flags: <defaults>
</compile_context>

<pallas_src>
import functools

import jax
import jax.numpy as jnp
from jax import lax
from jax.experimental import pallas as pl
from jax.experimental.pallas import tpu as pltpu


def _round_up(n, m):
    return ((n + m - 1) // m) * m


def _lstm_kernel(x_ref, w_ref, b_ref, hlast_ref, h_scr, c_scr, xh_scr,
                 *, tt, t_total, hp, ip):
    """One grid step == `tt` LSTM time steps. h/c live in VMEM scratch across grid steps."""
    g = pl.program_id(0)

    @pl.when(g == 0)
    def _():
        h_scr[...] = jnp.zeros_like(h_scr)
        c_scr[...] = jnp.zeros_like(c_scr)

    bp = h_scr.shape[0]
    w = w_ref[...]                                           # (Ip+Hp, 4*Hp) bf16, resident
    bias = jnp.broadcast_to(b_ref[...], (bp, 4 * hp))        # hoisted once per grid step

    needs_mask = (t_total % tt) != 0                         # static Python decision
    base = g * tt

    def step(i, carry):
        h, c = carry                                         # (Bp, Hp) f32
        # Stage [x_t | h] into one bf16 buffer -> single fused MXU matmul for all 4 gates.
        xh_scr[:, :ip] = x_ref[i]                            # (Bp, Ip) bf16
        xh_scr[:, ip:] = h.astype(jnp.bfloat16)              # (Bp, Hp) bf16
        gates = jnp.dot(xh_scr[...], w,
                        preferred_element_type=jnp.float32) + bias   # (Bp, 4*Hp) f32

        # PyTorch gate order: i, f, g, o — lane-aligned slices (Hp multiple of 128).
        i_g = jax.nn.sigmoid(gates[:, 0 * hp:1 * hp])
        f_g = jax.nn.sigmoid(gates[:, 1 * hp:2 * hp])
        g_g = jnp.tanh(gates[:, 2 * hp:3 * hp])
        o_g = jax.nn.sigmoid(gates[:, 3 * hp:4 * hp])

        c_new = f_g * c + i_g * g_g
        h_new = o_g * jnp.tanh(c_new)

        if needs_mask:                                       # only emitted if T % TT != 0
            valid = (base + i) < t_total
            h_new = jnp.where(valid, h_new, h)
            c_new = jnp.where(valid, c_new, c)
        return h_new, c_new

    h, c = lax.fori_loop(0, tt, step, (h_scr[...], c_scr[...]), unroll=True)
    h_scr[...] = h
    c_scr[...] = c

    @pl.when(g == pl.num_programs(0) - 1)
    def _():
        hlast_ref[...] = h                                   # lane-dense (Bp, Hp) f32


def lstm_predictor_forward(x, params, *, time_block=32):
    """x: (B, T, I) float32 (or (T, I), unsqueezed like the PyTorch module). Returns (B, O)."""
    if x.ndim == 2:
        x = x[None, ...]
    B, T, I = x.shape
    w_ih, w_hh, b_ih, b_hh, fc_w, fc_b = (params[k] for k in
                                          ("w_ih", "w_hh", "b_ih", "b_hh", "fc_w", "fc_b"))
    H = w_hh.shape[1]

    Bp = _round_up(max(B, 8), 8)
    Hp = _round_up(max(H, 128), 128)
    Ip = _round_up(max(I, 128), 128)
    TT = min(T, time_block)
    Tp = _round_up(T, TT)

    # --- fuse & pad recurrent weights: gate k occupies columns [k*Hp, k*Hp+H) ---
    wih_t = jnp.transpose(w_ih).astype(jnp.float32)          # (I, 4H)
    whh_t = jnp.transpose(w_hh).astype(jnp.float32)          # (H, 4H)
    b_sum = (b_ih + b_hh).astype(jnp.float32)                # (4H,)
    w_fused = jnp.zeros((Ip + Hp, 4 * Hp), jnp.float32)
    bias = jnp.zeros((1, 4 * Hp), jnp.float32)
    for k in range(4):
        w_fused = w_fused.at[:I, k * Hp:k * Hp + H].set(wih_t[:, k * H:(k + 1) * H])
        w_fused = w_fused.at[Ip:Ip + H, k * Hp:k * Hp + H].set(whh_t[:, k * H:(k + 1) * H])
        bias = bias.at[0, k * Hp:k * Hp + H].set(b_sum[k * H:(k + 1) * H])
    w_fused = w_fused.astype(jnp.bfloat16)                   # bf16 weights, f32 accumulation

    # --- pad x to (Tp, Bp, Ip), time-major, bf16 ---
    x_tm = jnp.transpose(x, (1, 0, 2)).astype(jnp.float32)
    x_pad = jnp.zeros((Tp, Bp, Ip), jnp.float32).at[:T, :B, :I].set(x_tm)
    x_pad = x_pad.astype(jnp.bfloat16)

    kernel = functools.partial(_lstm_kernel, tt=TT, t_total=T, hp=Hp, ip=Ip)

    h_last = pl.pallas_call(
        kernel,
        out_shape=jax.ShapeDtypeStruct((Bp, Hp), jnp.float32),
        grid_spec=pltpu.PrefetchScalarGridSpec(
            num_scalar_prefetch=0,
            grid=(Tp // TT,),
            in_specs=[
                pl.BlockSpec((TT, Bp, Ip), lambda t: (t, 0, 0)),        # x block (TT steps)
                pl.BlockSpec((Ip + Hp, 4 * Hp), lambda t: (0, 0)),      # fused [W_ih^T;W_hh^T]
                pl.BlockSpec((1, 4 * Hp), lambda t: (0, 0)),            # b_ih + b_hh
            ],
            out_specs=pl.BlockSpec((Bp, Hp), lambda t: (0, 0)),         # lane-dense h_last
            scratch_shapes=[
                pltpu.VMEM((Bp, Hp), jnp.float32),                      # h
                pltpu.VMEM((Bp, Hp), jnp.float32),                      # c
                pltpu.VMEM((Bp, Ip + Hp), jnp.bfloat16),                # [x_t | h] staging
            ],
        ),
        compiler_params=pltpu.CompilerParams(
            dimension_semantics=("arbitrary",)),                        # time is sequential
    )(x_pad, w_fused, bias)

    # TODO(synk): for real batch sizes expose a "parallel" batch grid axis (v7x dual-TC).
    # Final Linear (O may be 1) done lane-dense in XLA outside the kernel.
    h_real = h_last[:B, :H]
    return h_real @ jnp.transpose(fc_w).astype(jnp.float32) + fc_b.astype(jnp.float32)


def _reference_forward(x, params):
    """Pure-JAX f32 reference mirroring torch.nn.LSTM + Linear."""
    if x.ndim == 2:
        x = x[None, ...]
    w_ih, w_hh, b_ih, b_hh, fc_w, fc_b = (params[k] for k in
                                          ("w_ih", "w_hh", "b_ih", "b_hh", "fc_w", "fc_b"))
    H = w_hh.shape[1]
    B = x.shape[0]

    def step(carry, x_t):
        h, c = carry
        gates = x_t @ w_ih.T + h @ w_hh.T + b_ih + b_hh
        i = jax.nn.sigmoid(gates[:, 0 * H:1 * H])
        f = jax.nn.sigmoid(gates[:, 1 * H:2 * H])
        g = jnp.tanh(gates[:, 2 * H:3 * H])
        o = jax.nn.sigmoid(gates[:, 3 * H:4 * H])
        c = f * c + i * g
        h = o * jnp.tanh(c)
        return (h, c), None

    h0 = jnp.zeros((B, H), jnp.float32)
    c0 = jnp.zeros((B, H), jnp.float32)
    (h_last, _), _ = jax.lax.scan(step, (h0, c0), jnp.transpose(x, (1, 0, 2)))
    return h_last @ fc_w.T + fc_b


def make_params(key, input_size, hidden_size, output_size):
    ks = jax.random.split(key, 6)
    s = 1.0 / jnp.sqrt(hidden_size)
    return {
        "w_ih": jax.random.uniform(ks[0], (4 * hidden_size, input_size), jnp.float32, -s, s),
        "w_hh": jax.random.uniform(ks[1], (4 * hidden_size, hidden_size), jnp.float32, -s, s),
        "b_ih": jax.random.uniform(ks[2], (4 * hidden_size,), jnp.float32, -s, s),
        "b_hh": jax.random.uniform(ks[3], (4 * hidden_size,), jnp.float32, -s, s),
        "fc_w": jax.random.uniform(ks[4], (output_size, hidden_size), jnp.float32, -s, s),
        "fc_b": jax.random.uniform(ks[5], (output_size,), jnp.float32, -s, s),
    }


if __name__ == "__main__":
    B, T, I, H, O = 2, 8, 4, 32, 1
    key = jax.random.PRNGKey(0)
    k_x, k_p = jax.random.split(key)
    x = jax.random.normal(k_x, (B, T, I), jnp.float32)
    params = make_params(k_p, I, H, O)

    out = lstm_predictor_forward(x, params)
    jax.block_until_ready(out)

    ref = _reference_forward(x, params)
    assert out.shape == (B, O), (out.shape, (B, O))
    # bf16 MXU inputs (f32 accumulation) vs f32 reference -> bf16-appropriate tolerance.
    assert jnp.allclose(out, ref, atol=3e-2, rtol=3e-2), (out, ref)
    print("KERNEL_OK")
</pallas_src>

<mosaic_0001>
module attributes {stable_mosaic.version = 11 : i64} {
  func.func @_lstm_kernel(%arg0: i32, %arg1: memref<8x8x128xbf16, #tpu.memory_space<vmem>>, %arg2: memref<256x512xbf16, #tpu.memory_space<vmem>>, %arg3: memref<1x512xf32, #tpu.memory_space<vmem>>, %arg4: memref<8x128xf32, #tpu.memory_space<vmem>>, %arg5: memref<8x128xf32, #tpu.memory_space<vmem>>, %arg6: memref<8x128xf32, #tpu.memory_space<vmem>>, %arg7: memref<8x256xbf16, #tpu.memory_space<vmem>>) attributes {dimension_semantics = [#tpu.dimension_semantics<arbitrary>], iteration_bounds = array<i64: 1>, scalar_prefetch = 0 : i64, scratch_operands = 3 : i64, tpu.core_type = #tpu.core_type<tc>, window_params = [{transform_indices = @transform_0, window_bounds = array<i64: 8, 8, 128>}, {pipeline_mode = #tpu.pipeline_mode<synchronous>, transform_indices = @transform_1, window_bounds = array<i64: 256, 512>}, {pipeline_mode = #tpu.pipeline_mode<synchronous>, transform_indices = @transform_2, window_bounds = array<i64: 1, 512>}, {pipeline_mode = #tpu.pipeline_mode<synchronous>, transform_indices = @transform_3, window_bounds = array<i64: 8, 128>}]} {
    %c0_i32 = arith.constant 0 : i32
    %0 = arith.cmpi eq, %arg0, %c0_i32 : i32
    %1 = arith.extui %0 : i1 to i32
    %c0_i32_0 = arith.constant 0 : i32
    %2 = arith.cmpi ne, %1, %c0_i32_0 : i32
    scf.if %2 {
      %cst_109 = arith.constant 0.000000e+00 : f32
      %286 = vector.broadcast %cst_109 : f32 to vector<8x128xf32>
      %c0_110 = arith.constant 0 : index
      %c0_111 = arith.constant 0 : index
      %287 = vector.load %arg5[%c0_110, %c0_111] : memref<8x128xf32, #tpu.memory_space<vmem>>, vector<8x128xf32>
      tpu.vector_store %arg5[%c0_110, %c0_111], %286 {strides = array<i32>} : memref<8x128xf32, #tpu.memory_space<vmem>>, vector<8x128xf32>,
      %cst_112 = arith.constant 0.000000e+00 : f32
      %288 = vector.broadcast %cst_112 : f32 to vector<8x128xf32>
      %c0_113 = arith.constant 0 : index
      %c0_114 = arith.constant 0 : index
      %289 = vector.load %arg6[%c0_113, %c0_114] : memref<8x128xf32, #tpu.memory_space<vmem>>, vector<8x128xf32>
      tpu.vector_store %arg6[%c0_113, %c0_114], %288 {strides = array<i32>} : memref<8x128xf32, #tpu.memory_space<vmem>>, vector<8x128xf32>,
    } else {
    }
    %c0 = arith.constant 0 : index
    %c0_1 = arith.constant 0 : index
    %3 = vector.load %arg2[%c0, %c0_1] : memref<256x512xbf16, #tpu.memory_space<vmem>>, vector<256x512xbf16>
    %c0_2 = arith.constant 0 : index
    %c0_3 = arith.constant 0 : index
    %4 = vector.load %arg3[%c0_2, %c0_3] : memref<1x512xf32, #tpu.memory_space<vmem>>, vector<1x512xf32>
    %5 = vector.shape_cast %4 : vector<1x512xf32> to vector<1x512xf32>
    %6 = vector.broadcast %5 : vector<1x512xf32> to vector<8x512xf32>
    %c0_4 = arith.constant 0 : index
    %c0_5 = arith.constant 0 : index
    %7 = vector.load %arg5[%c0_4, %c0_5] : memref<8x128xf32, #tpu.memory_space<vmem>>, vector<8x128xf32>
    %c0_6 = arith.constant 0 : index
    %c0_7 = arith.constant 0 : index
    %8 = vector.load %arg6[%c0_6, %c0_7] : memref<8x128xf32, #tpu.memory_space<vmem>>, vector<8x128xf32>
    %c0_i32_8 = arith.constant 0 : i32
    %9 = arith.index_cast %c0_i32_8 : i32 to index
    %c0_9 = arith.constant 0 : index
    %c0_10 = arith.constant 0 : index
    %10 = vector.load %arg1[%9, %c0_9, %c0_10] : memref<8x8x128xbf16, #tpu.memory_space<vmem>>, vector<1x8x128xbf16>
    %11 = vector.shape_cast %10 : vector<1x8x128xbf16> to vector<8x128xbf16>
    %c0_11 = arith.constant 0 : index
    %c0_12 = arith.constant 0 : index
    %12 = vector.load %arg7[%c0_11, %c0_12] : memref<8x256xbf16, #tpu.memory_space<vmem>>, vector<8x128xbf16>
    tpu.vector_store %arg7[%c0_11, %c0_12], %11 {strides = array<i32>} : memref<8x256xbf16, #tpu.memory_space<vmem>>, vector<8x128xbf16>,
    %13 = arith.truncf %7 : vector<8x128xf32> to vector<8x128xbf16>
    %c0_13 = arith.constant 0 : index
    %c128 = arith.constant 128 : index
    %14 = vector.load %arg7[%c0_13, %c128] : memref<8x256xbf16, #tpu.memory_space<vmem>>, vector<8x128xbf16>
    tpu.vector_store %arg7[%c0_13, %c128], %13 {strides = array<i32>} : memref<8x256xbf16, #tpu.memory_space<vmem>>, vector<8x128xbf16>,
    %c0_14 = arith.constant 0 : index
    %c0_15 = arith.constant 0 : index
    %15 = vector.load %arg7[%c0_14, %c0_15] : memref<8x256xbf16, #tpu.memory_space<vmem>>, vector<8x256xbf16>
    %cst = arith.constant dense<0.000000e+00> : vector<8x512xf32>
    %16 = tpu.matmul %15, %3, %cst {dimension_numbers = #tpu.dot_dimension_numbers<[1], [0], [0], [1], [0, 0, 1, 1], [], []>} : vector<8x256xbf16>, vector<256x512xbf16>, vector<8x512xf32> -> vector<8x512xf32>
    %17 = arith.addf %16, %6 : vector<8x512xf32>
    %18 = vector.extract_strided_slice %17 {offsets = [0, 0], sizes = [8, 128], strides = [1, 1]} : vector<8x512xf32> to vector<8x128xf32>
    %19 = arith.negf %18 : vector<8x128xf32>
    %20 = math.exp %19 : vector<8x128xf32>
    %cst_16 = arith.constant 1.000000e+00 : f32
    %21 = vector.broadcast %cst_16 : f32 to vector<8x128xf32>
    %22 = arith.addf %21, %20 : vector<8x128xf32>
    %23 = arith.divf %21, %22 : vector<8x128xf32>
    %24 = vector.extract_strided_slice %17 {offsets = [0, 128], sizes = [8, 128], strides = [1, 1]} : vector<8x512xf32> to vector<8x128xf32>
    %25 = arith.negf %24 : vector<8x128xf32>
    %26 = math.exp %25 : vector<8x128xf32>
    %cst_17 = arith.constant 1.000000e+00 : f32
    %27 = vector.broadcast %cst_17 : f32 to vector<8x128xf32>
    %28 = arith.addf %27, %26 : vector<8x128xf32>
    %29 = arith.divf %27, %28 : vector<8x128xf32>
    %30 = vector.extract_strided_slice %17 {offsets = [0, 256], sizes = [8, 128], strides = [1, 1]} : vector<8x512xf32> to vector<8x128xf32>
    %31 = math.tanh %30 : vector<8x128xf32>
    %32 = vector.extract_strided_slice %17 {offsets = [0, 384], sizes = [8, 128], strides = [1, 1]} : vector<8x512xf32> to vector<8x128xf32>
    %33 = arith.negf %32 : vector<8x128xf32>
    %34 = math.exp %33 : vector<8x128xf32>
    %cst_18 = arith.constant 1.000000e+00 : f32
    %35 = vector.broadcast %cst_18 : f32 to vector<8x128xf32>
    %36 = arith.addf %35, %34 : vector<8x128xf32>
    %37 = arith.divf %35, %36 : vector<8x128xf32>
    %38 = arith.mulf %29, %8 : vector<8x128xf32>
    %39 = arith.mulf %23, %31 : vector<8x128xf32>
    %40 = arith.addf %38, %39 : vector<8x128xf32>
    %41 = math.tanh %40 : vector<8x128xf32>
    %42 = arith.mulf %37, %41 : vector<8x128xf32>
    %c1_i32 = arith.constant 1 : i32
    %43 = arith.index_cast %c1_i32 : i32 to index
    %c0_19 = arith.constant 0 : index
    %c0_20 = arith.constant 0 : index
    %44 = vector.load %arg1[%43, %c0_19, %c0_20] : memref<8x8x128xbf16, #tpu.memory_space<vmem>>, vector<1x8x128xbf16>
    %45 = vector.shape_cast %44 : vector<1x8x128xbf16> to vector<8x128xbf16>
    %c0_21 = arith.constant 0 : index
    %c0_22 = arith.constant 0 : index
    %46 = vector.load %arg7[%c0_21, %c0_22] : memref<8x256xbf16, #tpu.memory_space<vmem>>, vector<8x128xbf16>
    tpu.vector_store %arg7[%c0_21, %c0_22], %45 {strides = array<i32>} : memref<8x256xbf16, #tpu.memory_space<vmem>>, vector<8x128xbf16>,
    %47 = arith.truncf %42 : vector<8x128xf32> to vector<8x128xbf16>
    %c0_23 = arith.constant 0 : index
    %c128_24 = arith.constant 128 : index
    %48 = vector.load %arg7[%c0_23, %c128_24] : memref<8x256xbf16, #tpu.memory_space<vmem>>, vector<8x128xbf16>
    tpu.vector_store %arg7[%c0_23, %c128_24], %47 {strides = array<i32>} : memref<8x256xbf16, #tpu.memory_space<vmem>>, vector<8x128xbf16>,
    %c0_25 = arith.constant 0 : index
    %c0_26 = arith.constant 0 : index
    %49 = vector.load %arg7[%c0_25, %c0_26] : memref<8x256xbf16, #tpu.memory_space<vmem>>, vector<8x256xbf16>
    %cst_27 = arith.constant dense<0.000000e+00> : vector<8x512xf32>
    %50 = tpu.matmul %49, %3, %cst_27 {dimension_numbers = #tpu.dot_dimension_numbers<[1], [0], [0], [1], [0, 0, 1, 1], [], []>} : vector<8x256xbf16>, vector<256x512xbf16>, vector<8x512xf32> -> vector<8x512xf32>
    %51 = arith.addf %50, %6 : vector<8x512xf32>
    %52 = vector.extract_strided_slice %51 {offsets = [0, 0], sizes = [8, 128], strides = [1, 1]} : vector<8x512xf32> to vector<8x128xf32>
    %53 = arith.negf %52 : vector<8x128xf32>
    %54 = math.exp %53 : vector<8x128xf32>
    %cst_28 = arith.constant 1.000000e+00 : f32
    %55 = vector.broadcast %cst_28 : f32 to vector<8x128xf32>
    %56 = arith.addf %55, %54 : vector<8x128xf32>
    %57 = arith.divf %55, %56 : vector<8x128xf32>
    %58 = vector.extract_strided_slice %51 {offsets = [0, 128], sizes = [8, 128], strides = [1, 1]} : vector<8x512xf32> to vector<8x128xf32>
    %59 = arith.negf %58 : vector<8x128xf32>
    %60 = math.exp %59 : vector<8x128xf32>
    %cst_29 = arith.constant 1.000000e+00 : f32
    %61 = vector.broadcast %cst_29 : f32 to vector<8x128xf32>
    %62 = arith.addf %61, %60 : vector<8x128xf32>
    %63 = arith.divf %61, %62 : vector<8x128xf32>
    %64 = vector.extract_strided_slice %51 {offsets = [0, 256], sizes = [8, 128], strides = [1, 1]} : vector<8x512xf32> to vector<8x128xf32>
    %65 = math.tanh %64 : vector<8x128xf32>
    %66 = vector.extract_strided_slice %51 {offsets = [0, 384], sizes = [8, 128], strides = [1, 1]} : vector<8x512xf32> to vector<8x128xf32>
    %67 = arith.negf %66 : vector<8x128xf32>
    %68 = math.exp %67 : vector<8x128xf32>
    %cst_30 = arith.constant 1.000000e+00 : f32
    %69 = vector.broadcast %cst_30 : f32 to vector<8x128xf32>
    %70 = arith.addf %69, %68 : vector<8x128xf32>
    %71 = arith.divf %69, %70 : vector<8x128xf32>
    %72 = arith.mulf %63, %40 : vector<8x128xf32>
    %73 = arith.mulf %57, %65 : vector<8x128xf32>
    %74 = arith.addf %72, %73 : vector<8x128xf32>
    %75 = math.tanh %74 : vector<8x128xf32>
    %76 = arith.mulf %71, %75 : vector<8x128xf32>
    %c2_i32 = arith.constant 2 : i32
    %77 = arith.index_cast %c2_i32 : i32 to index
    %c0_31 = arith.constant 0 : index
    %c0_32 = arith.constant 0 : index
    %78 = vector.load %arg1[%77, %c0_31, %c0_32] : memref<8x8x128xbf16, #tpu.memory_space<vmem>>, vector<1x8x128xbf16>
    %79 = vector.shape_cast %78 : vector<1x8x128xbf16> to vector<8x128xbf16>
    %c0_33 = arith.constant 0 : index
    %c0_34 = arith.constant 0 : index
    %80 = vector.load %arg7[%c0_33, %c0_34] : memref<8x256xbf16, #tpu.memory_space<vmem>>, vector<8x128xbf16>
    tpu.vector_store %arg7[%c0_33, %c0_34], %79 {strides = array<i32>} : memref<8x256xbf16, #tpu.memory_space<vmem>>, vector<8x128xbf16>,
    %81 = arith.truncf %76 : vector<8x128xf32> to vector<8x128xbf16>
    %c0_35 = arith.constant 0 : index
    %c128_36 = arith.constant 128 : index
    %82 = vector.load %arg7[%c0_35, %c128_36] : memref<8x256xbf16, #tpu.memory_space<vmem>>, vector<8x128xbf16>
    tpu.vector_store %arg7[%c0_35, %c128_36], %81 {strides = array<i32>} : memref<8x256xbf16, #tpu.memory_space<vmem>>, vector<8x128xbf16>,
    %c0_37 = arith.constant 0 : index
    %c0_38 = arith.constant 0 : index
    %83 = vector.load %arg7[%c0_37, %c0_38] : memref<8x256xbf16, #tpu.memory_space<vmem>>, vector<8x256xbf16>
    %cst_39 = arith.constant dense<0.000000e+00> : vector<8x512xf32>
    %84 = tpu.matmul %83, %3, %cst_39 {dimension_numbers = #tpu.dot_dimension_numbers<[1], [0], [0], [1], [0, 0, 1, 1], [], []>} : vector<8x256xbf16>, vector<256x512xbf16>, vector<8x512xf32> -> vector<8x512xf32>
    %85 = arith.addf %84, %6 : vector<8x512xf32>
    %86 = vector.extract_strided_slice %85 {offsets = [0, 0], sizes = [8, 128], strides = [1, 1]} : vector<8x512xf32> to vector<8x128xf32>
    %87 = arith.negf %86 : vector<8x128xf32>
    %88 = math.exp %87 : vector<8x128xf32>
    %cst_40 = arith.constant 1.000000e+00 : f32
    %89 = vector.broadcast %cst_40 : f32 to vector<8x128xf32>
    %90 = arith.addf %89, %88 : vector<8x128xf32>
    %91 = arith.divf %89, %90 : vector<8x128xf32>
    %92 = vector.extract_strided_slice %85 {offsets = [0, 128], sizes = [8, 128], strides = [1, 1]} : vector<8x512xf32> to vector<8x128xf32>
    %93 = arith.negf %92 : vector<8x128xf32>
    %94 = math.exp %93 : vector<8x128xf32>
    %cst_41 = arith.constant 1.000000e+00 : f32
    %95 = vector.broadcast %cst_41 : f32 to vector<8x128xf32>
    %96 = arith.addf %95, %94 : vector<8x128xf32>
    %97 = arith.divf %95, %96 : vector<8x128xf32>
    %98 = vector.extract_strided_slice %85 {offsets = [0, 256], sizes = [8, 128], strides = [1, 1]} : vector<8x512xf32> to vector<8x128xf32>
    %99 = math.tanh %98 : vector<8x128xf32>
    %100 = vector.extract_strided_slice %85 {offsets = [0, 384], sizes = [8, 128], strides = [1, 1]} : vector<8x512xf32> to vector<8x128xf32>
    %101 = arith.negf %100 : vector<8x128xf32>
    %102 = math.exp %101 : vector<8x128xf32>
    %cst_42 = arith.constant 1.000000e+00 : f32
    %103 = vector.broadcast %cst_42 : f32 to vector<8x128xf32>
    %104 = arith.addf %103, %102 : vector<8x128xf32>
    %105 = arith.divf %103, %104 : vector<8x128xf32>
    %106 = arith.mulf %97, %74 : vector<8x128xf32>
    %107 = arith.mulf %91, %99 : vector<8x128xf32>
    %108 = arith.addf %106, %107 : vector<8x128xf32>
    %109 = math.tanh %108 : vector<8x128xf32>
    %110 = arith.mulf %105, %109 : vector<8x128xf32>
    %c3_i32 = arith.constant 3 : i32
    %111 = arith.index_cast %c3_i32 : i32 to index
    %c0_43 = arith.constant 0 : index
    %c0_44 = arith.constant 0 : index
    %112 = vector.load %arg1[%111, %c0_43, %c0_44] : memref<8x8x128xbf16, #tpu.memory_space<vmem>>, vector<1x8x128xbf16>
    %113 = vector.shape_cast %112 : vector<1x8x128xbf16> to vector<8x128xbf16>
    %c0_45 = arith.constant 0 : index
    %c0_46 = arith.constant 0 : index
    %114 = vector.load %arg7[%c0_45, %c0_46] : memref<8x256xbf16, #tpu.memory_space<vmem>>, vector<8x128xbf16>
    tpu.vector_store %arg7[%c0_45, %c0_46], %113 {strides = array<i32>} : memref<8x256xbf16, #tpu.memory_space<vmem>>, vector<8x128xbf16>,
    %115 = arith.truncf %110 : vector<8x128xf32> to vector<8x128xbf16>
    %c0_47 = arith.constant 0 : index
    %c128_48 = arith.constant 128 : index
    %116 = vector.load %arg7[%c0_47, %c128_48] : memref<8x256xbf16, #tpu.memory_space<vmem>>, vector<8x128xbf16>
    tpu.vector_store %arg7[%c0_47, %c128_48], %115 {strides = array<i32>} : memref<8x256xbf16, #tpu.memory_space<vmem>>, vector<8x128xbf16>,
    %c0_49 = arith.constant 0 : index
    %c0_50 = arith.constant 0 : index
    %117 = vector.load %arg7[%c0_49, %c0_50] : memref<8x256xbf16, #tpu.memory_space<vmem>>, vector<8x256xbf16>
    %cst_51 = arith.constant dense<0.000000e+00> : vector<8x512xf32>
    %118 = tpu.matmul %117, %3, %cst_51 {dimension_numbers = #tpu.dot_dimension_numbers<[1], [0], [0], [1], [0, 0, 1, 1], [], []>} : vector<8x256xbf16>, vector<256x512xbf16>, vector<8x512xf32> -> vector<8x512xf32>
    %119 = arith.addf %118, %6 : vector<8x512xf32>
    %120 = vector.extract_strided_slice %119 {offsets = [0, 0], sizes = [8, 128], strides = [1, 1]} : vector<8x512xf32> to vector<8x128xf32>
    %121 = arith.negf %120 : vector<8x128xf32>
    %122 = math.exp %121 : vector<8x128xf32>
    %cst_52 = arith.constant 1.000000e+00 : f32
    %123 = vector.broadcast %cst_52 : f32 to vector<8x128xf32>
    %124 = arith.addf %123, %122 : vector<8x128xf32>
    %125 = arith.divf %123, %124 : vector<8x128xf32>
    %126 = vector.extract_strided_slice %119 {offsets = [0, 128], sizes = [8, 128], strides = [1, 1]} : vector<8x512xf32> to vector<8x128xf32>
    %127 = arith.negf %126 : vector<8x128xf32>
    %128 = math.exp %127 : vector<8x128xf32>
    %cst_53 = arith.constant 1.000000e+00 : f32
    %129 = vector.broadcast %cst_53 : f32 to vector<8x128xf32>
    %130 = arith.addf %129, %128 : vector<8x128xf32>
    %131 = arith.divf %129, %130 : vector<8x128xf32>
    %132 = vector.extract_strided_slice %119 {offsets = [0, 256], sizes = [8, 128], strides = [1, 1]} : vector<8x512xf32> to vector<8x128xf32>
    %133 = math.tanh %132 : vector<8x128xf32>
    %134 = vector.extract_strided_slice %119 {offsets = [0, 384], sizes = [8, 128], strides = [1, 1]} : vector<8x512xf32> to vector<8x128xf32>
    %135 = arith.negf %134 : vector<8x128xf32>
    %136 = math.exp %135 : vector<8x128xf32>
    %cst_54 = arith.constant 1.000000e+00 : f32
    %137 = vector.broadcast %cst_54 : f32 to vector<8x128xf32>
    %138 = arith.addf %137, %136 : vector<8x128xf32>
    %139 = arith.divf %137, %138 : vector<8x128xf32>
    %140 = arith.mulf %131, %108 : vector<8x128xf32>
    %141 = arith.mulf %125, %133 : vector<8x128xf32>
    %142 = arith.addf %140, %141 : vector<8x128xf32>
    %143 = math.tanh %142 : vector<8x128xf32>
    %144 = arith.mulf %139, %143 : vector<8x128xf32>
    %c4_i32 = arith.constant 4 : i32
    %145 = arith.index_cast %c4_i32 : i32 to index
    %c0_55 = arith.constant 0 : index
    %c0_56 = arith.constant 0 : index
    %146 = vector.load %arg1[%145, %c0_55, %c0_56] : memref<8x8x128xbf16, #tpu.memory_space<vmem>>, vector<1x8x128xbf16>
    %147 = vector.shape_cast %146 : vector<1x8x128xbf16> to vector<8x128xbf16>
    %c0_57 = arith.constant 0 : index
    %c0_58 = arith.constant 0 : index
    %148 = vector.load %arg7[%c0_57, %c0_58] : memref<8x256xbf16, #tpu.memory_space<vmem>>, vector<8x128xbf16>
    tpu.vector_store %arg7[%c0_57, %c0_58], %147 {strides = array<i32>} : memref<8x256xbf16, #tpu.memory_space<vmem>>, vector<8x128xbf16>,
    %149 = arith.truncf %144 : vector<8x128xf32> to vector<8x128xbf16>
    %c0_59 = arith.constant 0 : index
    %c128_60 = arith.constant 128 : index
    %150 = vector.load %arg7[%c0_59, %c128_60] : memref<8x256xbf16, #tpu.memory_space<vmem>>, vector<8x128xbf16>
    tpu.vector_store %arg7[%c0_59, %c128_60], %149 {strides = array<i32>} : memref<8x256xbf16, #tpu.memory_space<vmem>>, vector<8x128xbf16>,
    %c0_61 = arith.constant 0 : index
    %c0_62 = arith.constant 0 : index
    %151 = vector.load %arg7[%c0_61, %c0_62] : memref<8x256xbf16, #tpu.memory_space<vmem>>, vector<8x256xbf16>
    %cst_63 = arith.constant dense<0.000000e+00> : vector<8x512xf32>
    %152 = tpu.matmul %151, %3, %cst_63 {dimension_numbers = #tpu.dot_dimension_numbers<[1], [0], [0], [1], [0, 0, 1, 1], [], []>} : vector<8x256xbf16>, vector<256x512xbf16>, vector<8x512xf32> -> vector<8x512xf32>
    %153 = arith.addf %152, %6 : vector<8x512xf32>
    %154 = vector.extract_strided_slice %153 {offsets = [0, 0], sizes = [8, 128], strides = [1, 1]} : vector<8x512xf32> to vector<8x128xf32>
    %155 = arith.negf %154 : vector<8x128xf32>
    %156 = math.exp %155 : vector<8x128xf32>
    %cst_64 = arith.constant 1.000000e+00 : f32
    %157 = vector.broadcast %cst_64 : f32 to vector<8x128xf32>
    %158 = arith.addf %157, %156 : vector<8x128xf32>
    %159 = arith.divf %157, %158 : vector<8x128xf32>
    %160 = vector.extract_strided_slice %153 {offsets = [0, 128], sizes = [8, 128], strides = [1, 1]} : vector<8x512xf32> to vector<8x128xf32>
    %161 = arith.negf %160 : vector<8x128xf32>
    %162 = math.exp %161 : vector<8x128xf32>
    %cst_65 = arith.constant 1.000000e+00 : f32
    %163 = vector.broadcast %cst_65 : f32 to vector<8x128xf32>
    %164 = arith.addf %163, %162 : vector<8x128xf32>
    %165 = arith.divf %163, %164 : vector<8x128xf32>
    %166 = vector.extract_strided_slice %153 {offsets = [0, 256], sizes = [8, 128], strides = [1, 1]} : vector<8x512xf32> to vector<8x128xf32>
    %167 = math.tanh %166 : vector<8x128xf32>
    %168 = vector.extract_strided_slice %153 {offsets = [0, 384], sizes = [8, 128], strides = [1, 1]} : vector<8x512xf32> to vector<8x128xf32>
    %169 = arith.negf %168 : vector<8x128xf32>
    %170 = math.exp %169 : vector<8x128xf32>
    %cst_66 = arith.constant 1.000000e+00 : f32
    %171 = vector.broadcast %cst_66 : f32 to vector<8x128xf32>
    %172 = arith.addf %171, %170 : vector<8x128xf32>
    %173 = arith.divf %171, %172 : vector<8x128xf32>
    %174 = arith.mulf %165, %142 : vector<8x128xf32>
    %175 = arith.mulf %159, %167 : vector<8x128xf32>
    %176 = arith.addf %174, %175 : vector<8x128xf32>
    %177 = math.tanh %176 : vector<8x128xf32>
    %178 = arith.mulf %173, %177 : vector<8x128xf32>
    %c5_i32 = arith.constant 5 : i32
    %179 = arith.index_cast %c5_i32 : i32 to index
    %c0_67 = arith.constant 0 : index
    %c0_68 = arith.constant 0 : index
    %180 = vector.load %arg1[%179, %c0_67, %c0_68] : memref<8x8x128xbf16, #tpu.memory_space<vmem>>, vector<1x8x128xbf16>
    %181 = vector.shape_cast %180 : vector<1x8x128xbf16> to vector<8x128xbf16>
    %c0_69 = arith.constant 0 : index
    %c0_70 = arith.constant 0 : index
    %182 = vector.load %arg7[%c0_69, %c0_70] : memref<8x256xbf16, #tpu.memory_space<vmem>>, vector<8x128xbf16>
    tpu.vector_store %arg7[%c0_69, %c0_70], %181 {strides = array<i32>} : memref<8x256xbf16, #tpu.memory_space<vmem>>, vector<8x128xbf16>,
    %183 = arith.truncf %178 : vector<8x128xf32> to vector<8x128xbf16>
    %c0_71 = arith.constant 0 : index
    %c128_72 = arith.constant 128 : index
    %184 = vector.load %arg7[%c0_71, %c128_72] : memref<8x256xbf16, #tpu.memory_space<vmem>>, vector<8x128xbf16>
    tpu.vector_store %arg7[%c0_71, %c128_72], %183 {strides = array<i32>} : memref<8x256xbf16, #tpu.memory_space<vmem>>, vector<8x128xbf16>,
    %c0_73 = arith.constant 0 : index
    %c0_74 = arith.constant 0 : index
    %185 = vector.load %arg7[%c0_73, %c0_74] : memref<8x256xbf16, #tpu.memory_space<vmem>>, vector<8x256xbf16>
    %cst_75 = arith.constant dense<0.000000e+00> : vector<8x512xf32>
    %186 = tpu.matmul %185, %3, %cst_75 {dimension_numbers = #tpu.dot_dimension_numbers<[1], [0], [0], [1], [0, 0, 1, 1], [], []>} : vector<8x256xbf16>, vector<256x512xbf16>, vector<8x512xf32> -> vector<8x512xf32>
    %187 = arith.addf %186, %6 : vector<8x512xf32>
    %188 = vector.extract_strided_slice %187 {offsets = [0, 0], sizes = [8, 128], strides = [1, 1]} : vector<8x512xf32> to vector<8x128xf32>
    %189 = arith.negf %188 : vector<8x128xf32>
    %190 = math.exp %189 : vector<8x128xf32>
    %cst_76 = arith.constant 1.000000e+00 : f32
    %191 = vector.broadcast %cst_76 : f32 to vector<8x128xf32>
    %192 = arith.addf %191, %190 : vector<8x128xf32>
    %193 = arith.divf %191, %192 : vector<8x128xf32>
    %194 = vector.extract_strided_slice %187 {offsets = [0, 128], sizes = [8, 128], strides = [1, 1]} : vector<8x512xf32> to vector<8x128xf32>
    %195 = arith.negf %194 : vector<8x128xf32>
    %196 = math.exp %195 : vector<8x128xf32>
    %cst_77 = arith.constant 1.000000e+00 : f32
    %197 = vector.broadcast %cst_77 : f32 to vector<8x128xf32>
    %198 = arith.addf %197, %196 : vector<8x128xf32>
    %199 = arith.divf %197, %198 : vector<8x128xf32>
    %200 = vector.extract_strided_slice %187 {offsets = [0, 256], sizes = [8, 128], strides = [1, 1]} : vector<8x512xf32> to vector<8x128xf32>
    %201 = math.tanh %200 : vector<8x128xf32>
    %202 = vector.extract_strided_slice %187 {offsets = [0, 384], sizes = [8, 128], strides = [1, 1]} : vector<8x512xf32> to vector<8x128xf32>
    %203 = arith.negf %202 : vector<8x128xf32>
    %204 = math.exp %203 : vector<8x128xf32>
    %cst_78 = arith.constant 1.000000e+00 : f32
    %205 = vector.broadcast %cst_78 : f32 to vector<8x128xf32>
    %206 = arith.addf %205, %204 : vector<8x128xf32>
    %207 = arith.divf %205, %206 : vector<8x128xf32>
    %208 = arith.mulf %199, %176 : vector<8x128xf32>
    %209 = arith.mulf %193, %201 : vector<8x128xf32>
    %210 = arith.addf %208, %209 : vector<8x128xf32>
    %211 = math.tanh %210 : vector<8x128xf32>
    %212 = arith.mulf %207, %211 : vector<8x128xf32>
    %c6_i32 = arith.constant 6 : i32
    %213 = arith.index_cast %c6_i32 : i32 to index
    %c0_79 = arith.constant 0 : index
    %c0_80 = arith.constant 0 : index
    %214 = vector.load %arg1[%213, %c0_79, %c0_80] : memref<8x8x128xbf16, #tpu.memory_space<vmem>>, vector<1x8x128xbf16>
    %215 = vector.shape_cast %214 : vector<1x8x128xbf16> to vector<8x128xbf16>
    %c0_81 = arith.constant 0 : index
    %c0_82 = arith.constant 0 : index
    %216 = vector.load %arg7[%c0_81, %c0_82] : memref<8x256xbf16, #tpu.memory_space<vmem>>, vector<8x128xbf16>
    tpu.vector_store %arg7[%c0_81, %c0_82], %215 {strides = array<i32>} : memref<8x256xbf16, #tpu.memory_space<vmem>>, vector<8x128xbf16>,
    %217 = arith.truncf %212 : vector<8x128xf32> to vector<8x128xbf16>
    %c0_83 = arith.constant 0 : index
    %c128_84 = arith.constant 128 : index
    %218 = vector.load %arg7[%c0_83, %c128_84] : memref<8x256xbf16, #tpu.memory_space<vmem>>, vector<8x128xbf16>
    tpu.vector_store %arg7[%c0_83, %c128_84], %217 {strides = array<i32>} : memref<8x256xbf16, #tpu.memory_space<vmem>>, vector<8x128xbf16>,
    %c0_85 = arith.constant 0 : index
    %c0_86 = arith.constant 0 : index
    %219 = vector.load %arg7[%c0_85, %c0_86] : memref<8x256xbf16, #tpu.memory_space<vmem>>, vector<8x256xbf16>
    %cst_87 = arith.constant dense<0.000000e+00> : vector<8x512xf32>
    %220 = tpu.matmul %219, %3, %cst_87 {dimension_numbers = #tpu.dot_dimension_numbers<[1], [0], [0], [1], [0, 0, 1, 1], [], []>} : vector<8x256xbf16>, vector<256x512xbf16>, vector<8x512xf32> -> vector<8x512xf32>
    %221 = arith.addf %220, %6 : vector<8x512xf32>
    %222 = vector.extract_strided_slice %221 {offsets = [0, 0], sizes = [8, 128], strides = [1, 1]} : vector<8x512xf32> to vector<8x128xf32>
    %223 = arith.negf %222 : vector<8x128xf32>
    %224 = math.exp %223 : vector<8x128xf32>
    %cst_88 = arith.constant 1.000000e+00 : f32
    %225 = vector.broadcast %cst_88 : f32 to vector<8x128xf32>
    %226 = arith.addf %225, %224 : vector<8x128xf32>
    %227 = arith.divf %225, %226 : vector<8x128xf32>
    %228 = vector.extract_strided_slice %221 {offsets = [0, 128], sizes = [8, 128], strides = [1, 1]} : vector<8x512xf32> to vector<8x128xf32>
    %229 = arith.negf %228 : vector<8x128xf32>
    %230 = math.exp %229 : vector<8x128xf32>
    %cst_89 = arith.constant 1.000000e+00 : f32
    %231 = vector.broadcast %cst_89 : f32 to vector<8x128xf32>
    %232 = arith.addf %231, %230 : vector<8x128xf32>
    %233 = arith.divf %231, %232 : vector<8x128xf32>
    %234 = vector.extract_strided_slice %221 {offsets = [0, 256], sizes = [8, 128], strides = [1, 1]} : vector<8x512xf32> to vector<8x128xf32>
    %235 = math.tanh %234 : vector<8x128xf32>
    %236 = vector.extract_strided_slice %221 {offsets = [0, 384], sizes = [8, 128], strides = [1, 1]} : vector<8x512xf32> to vector<8x128xf32>
    %237 = arith.negf %236 : vector<8x128xf32>
    %238 = math.exp %237 : vector<8x128xf32>
    %cst_90 = arith.constant 1.000000e+00 : f32
    %239 = vector.broadcast %cst_90 : f32 to vector<8x128xf32>
    %240 = arith.addf %239, %238 : vector<8x128xf32>
    %241 = arith.divf %239, %240 : vector<8x128xf32>
    %242 = arith.mulf %233, %210 : vector<8x128xf32>
    %243 = arith.mulf %227, %235 : vector<8x128xf32>
    %244 = arith.addf %242, %243 : vector<8x128xf32>
    %245 = math.tanh %244 : vector<8x128xf32>
    %246 = arith.mulf %241, %245 : vector<8x128xf32>
    %c7_i32 = arith.constant 7 : i32
    %247 = arith.index_cast %c7_i32 : i32 to index
    %c0_91 = arith.constant 0 : index
    %c0_92 = arith.constant 0 : index
    %248 = vector.load %arg1[%247, %c0_91, %c0_92] : memref<8x8x128xbf16, #tpu.memory_space<vmem>>, vector<1x8x128xbf16>
    %249 = vector.shape_cast %248 : vector<1x8x128xbf16> to vector<8x128xbf16>
    %c0_93 = arith.constant 0 : index
    %c0_94 = arith.constant 0 : index
    %250 = vector.load %arg7[%c0_93, %c0_94] : memref<8x256xbf16, #tpu.memory_space<vmem>>, vector<8x128xbf16>
    tpu.vector_store %arg7[%c0_93, %c0_94], %249 {strides = array<i32>} : memref<8x256xbf16, #tpu.memory_space<vmem>>, vector<8x128xbf16>,
    %251 = arith.truncf %246 : vector<8x128xf32> to vector<8x128xbf16>
    %c0_95 = arith.constant 0 : index
    %c128_96 = arith.constant 128 : index
    %252 = vector.load %arg7[%c0_95, %c128_96] : memref<8x256xbf16, #tpu.memory_space<vmem>>, vector<8x128xbf16>
    tpu.vector_store %arg7[%c0_95, %c128_96], %251 {strides = array<i32>} : memref<8x256xbf16, #tpu.memory_space<vmem>>, vector<8x128xbf16>,
    %c0_97 = arith.constant 0 : index
    %c0_98 = arith.constant 0 : index
    %253 = vector.load %arg7[%c0_97, %c0_98] : memref<8x256xbf16, #tpu.memory_space<vmem>>, vector<8x256xbf16>
    %cst_99 = arith.constant dense<0.000000e+00> : vector<8x512xf32>
    %254 = tpu.matmul %253, %3, %cst_99 {dimension_numbers = #tpu.dot_dimension_numbers<[1], [0], [0], [1], [0, 0, 1, 1], [], []>} : vector<8x256xbf16>, vector<256x512xbf16>, vector<8x512xf32> -> vector<8x512xf32>
    %255 = arith.addf %254, %6 : vector<8x512xf32>
    %256 = vector.extract_strided_slice %255 {offsets = [0, 0], sizes = [8, 128], strides = [1, 1]} : vector<8x512xf32> to vector<8x128xf32>
    %257 = arith.negf %256 : vector<8x128xf32>
    %258 = math.exp %257 : vector<8x128xf32>
    %cst_100 = arith.constant 1.000000e+00 : f32
    %259 = vector.broadcast %cst_100 : f32 to vector<8x128xf32>
    %260 = arith.addf %259, %258 : vector<8x128xf32>
    %261 = arith.divf %259, %260 : vector<8x128xf32>
    %262 = vector.extract_strided_slice %255 {offsets = [0, 128], sizes = [8, 128], strides = [1, 1]} : vector<8x512xf32> to vector<8x128xf32>
    %263 = arith.negf %262 : vector<8x128xf32>
    %264 = math.exp %263 : vector<8x128xf32>
    %cst_101 = arith.constant 1.000000e+00 : f32
    %265 = vector.broadcast %cst_101 : f32 to vector<8x128xf32>
    %266 = arith.addf %265, %264 : vector<8x128xf32>
    %267 = arith.divf %265, %266 : vector<8x128xf32>
    %268 = vector.extract_strided_slice %255 {offsets = [0, 256], sizes = [8, 128], strides = [1, 1]} : vector<8x512xf32> to vector<8x128xf32>
    %269 = math.tanh %268 : vector<8x128xf32>
    %270 = vector.extract_strided_slice %255 {offsets = [0, 384], sizes = [8, 128], strides = [1, 1]} : vector<8x512xf32> to vector<8x128xf32>
    %271 = arith.negf %270 : vector<8x128xf32>
    %272 = math.exp %271 : vector<8x128xf32>
    %cst_102 = arith.constant 1.000000e+00 : f32
    %273 = vector.broadcast %cst_102 : f32 to vector<8x128xf32>
    %274 = arith.addf %273, %272 : vector<8x128xf32>
    %275 = arith.divf %273, %274 : vector<8x128xf32>
    %276 = arith.mulf %267, %244 : vector<8x128xf32>
    %277 = arith.mulf %261, %269 : vector<8x128xf32>
    %278 = arith.addf %276, %277 : vector<8x128xf32>
    %279 = math.tanh %278 : vector<8x128xf32>
    %280 = arith.mulf %275, %279 : vector<8x128xf32>
    %c8_i32 = arith.constant 8 : i32
    %c0_103 = arith.constant 0 : index
    %c0_104 = arith.constant 0 : index
    %281 = vector.load %arg5[%c0_103, %c0_104] : memref<8x128xf32, #tpu.memory_space<vmem>>, vector<8x128xf32>
    tpu.vector_store %arg5[%c0_103, %c0_104], %280 {strides = array<i32>} : memref<8x128xf32, #tpu.memory_space<vmem>>, vector<8x128xf32>,
    %c0_105 = arith.constant 0 : index
    %c0_106 = arith.constant 0 : index
    %282 = vector.load %arg6[%c0_105, %c0_106] : memref<8x128xf32, #tpu.memory_space<vmem>>, vector<8x128xf32>
    tpu.vector_store %arg6[%c0_105, %c0_106], %278 {strides = array<i32>} : memref<8x128xf32, #tpu.memory_space<vmem>>, vector<8x128xf32>,
    %c0_i32_107 = arith.constant 0 : i32
    %283 = arith.cmpi eq, %arg0, %c0_i32_107 : i32
    %284 = arith.extui %283 : i1 to i32
    %c0_i32_108 = arith.constant 0 : i32
    %285 = arith.cmpi ne, %284, %c0_i32_108 : i32
    scf.if %285 {
      %c0_109 = arith.constant 0 : index
      %c0_110 = arith.constant 0 : index
      %286 = vector.load %arg4[%c0_109, %c0_110] : memref<8x128xf32, #tpu.memory_space<vmem>>, vector<8x128xf32>
      tpu.vector_store %arg4[%c0_109, %c0_110], %280 {strides = array<i32>} : memref<8x128xf32, #tpu.memory_space<vmem>>, vector<8x128xf32>,
    } else {
    }
    return
  }
  func.func @transform_0(%arg0: i32) -> (i32, i32, i32) {
    %c0_i32 = arith.constant 0 : i32
    %c0_i32_0 = arith.constant 0 : i32
    %c0_i32_1 = arith.constant 0 : i32
    return %arg0, %c0_i32, %c0_i32_0 : i32, i32, i32
  }
  func.func @transform_1(%arg0: i32) -> (i32, i32) {
    %c0_i32 = arith.constant 0 : i32
    %c0_i32_0 = arith.constant 0 : i32
    %c0_i32_1 = arith.constant 0 : i32
    return %c0_i32, %c0_i32_0 : i32, i32
  }
  func.func @transform_2(%arg0: i32) -> (i32, i32) {
    %c0_i32 = arith.constant 0 : i32
    %c0_i32_0 = arith.constant 0 : i32
    %c0_i32_1 = arith.constant 0 : i32
    return %c0_i32, %c0_i32_0 : i32, i32
  }
  func.func @transform_3(%arg0: i32) -> (i32, i32) {
    %c0_i32 = arith.constant 0 : i32
    %c0_i32_0 = arith.constant 0 : i32
    %c0_i32_1 = arith.constant 0 : i32
    return %c0_i32, %c0_i32_0 : i32, i32
  }
}

</mosaic_0001>

<llo_original>
// kernel: tpu_custom_call.1
$region0: #{tpu_custom_call.1}
  #allocation0 [shape = 'u32[]', space=smem, size = 0x4, offset = 0x4, fixed_abs, tag = 'smem constant byte address 0x4 - core index']
  #allocation1 [shape = 'u32[72,128]{1,0:T(1,128)}', space=vmem, size = 0x9000, scoped, tag = 'internal scratch']
  #allocation2 [shape = 'f32[8,128]{1,0:T(8,128)}', space=vmem, size = 0x1000, scoped, tag = 'scratch operand']
  #allocation3 [shape = 'f32[8,128]{1,0:T(8,128)}', space=vmem, size = 0x1000, scoped, tag = 'scratch operand']
  #allocation4 [shape = 'bf16[8,256]{1,0:T(8,128)(2,1)}', space=vmem, size = 0x1000, scoped, tag = 'scratch operand']
  %s0 = inlined_call_operand.hbm [shape: bf16[8,8,128], index: 0, kind: input, shape index: {}]
  %s1 = inlined_call_operand.hbm [shape: bf16[256,512], index: 1, kind: input, shape index: {}]
  %s2 = inlined_call_operand.hbm [shape: f32[1,512], index: 2, kind: input, shape index: {}]
  %s3 = inlined_call_operand.hbm [shape: f32[8,128], index: 3, kind: output, shape index: {}]
  %s4 = sld [smem:[#allocation0]]
  $region42: #{tpu_custom_call.1} parent=0
    _
  %s6 = ssub.s32 1, %s4
  %s7 = scalar_select 0, %s6, %s4
  $region1: #{tpu_custom_call.1} parent=0
    #allocation5 [shape = 'u8[16384]{0}', space=vmem, size = 0x4000, scoped, tag = 'input window, operand 0, single buffered']
    #allocation6 [shape = 's32[1]{0}', space=sflag, size = 0x4, scoped, tag = 'scoped memory for tpu_custom_call.1']
    #allocation7 [shape = 's32[1]{0}', space=sflag, size = 0x4, scoped, tag = 'scoped memory for tpu_custom_call.1']
    #allocation8 [shape = 'u8[262144]{0}', space=vmem, size = 0x40000, scoped, tag = 'input window, operand 1, single buffered']
    #allocation9 [shape = 's32[1]{0}', space=sflag, size = 0x4, scoped, tag = 'scoped memory for tpu_custom_call.1']
    #allocation10 [shape = 'u8[2048]{0}', space=vmem, size = 0x800, scoped, tag = 'input window, operand 2, single buffered']
    #allocation11 [shape = 'u8[4096]{0}', space=vmem, size = 0x1000, scoped, tag = 'output window, operand 0, single buffered']
    %8 = vsyncpa [#allocation6], 0
    %9 = vsyncpa [#allocation9], 0
    %10 = vsyncpa [#allocation7], 0
    // Predicated region
    $region2: #{tpu_custom_call.1} parent=1 // pred_check
      _
    $region3: #{tpu_custom_call.1} parent=1 // pred_check_branch
      %12 = sbr.rel (0) target = $region5
    $region4: #{tpu_custom_call.1} parent=1 // pred_region
      %14 = vsyncadd [#allocation6], 0
      %s15 = sshll.u32 %s0, 4
      %s16 = int_to_ptr.hbm [resolvable:$true] %s15
      %s17 = sshll.u32 [#allocation5], 4
      %s18 = int_to_ptr.vmem [resolvable:$true] %s17
      %23 = dma.hbm_to_vmem [thread:$0]  %s16, 512, %s18, [#allocation6], 64, 64, 4
    $region5: #{tpu_custom_call.1} parent=1 // pred_fallthru
      _
    // Predicated region
    $region6: #{tpu_custom_call.1} parent=1 // pred_check
      _
    $region7: #{tpu_custom_call.1} parent=1 // pred_check_branch
      %25 = sbr.rel (0) target = $region9
    $region8: #{tpu_custom_call.1} parent=1 // pred_region
      %27 = vsyncadd [#allocation9], 0
      %s28 = sshll.u32 %s1, 4
      %s29 = int_to_ptr.hbm [resolvable:$true] %s28
      %s30 = sshll.u32 [#allocation8], 4
      %s31 = int_to_ptr.vmem [resolvable:$true] %s30
      %36 = dma.hbm_to_vmem [thread:$0]  %s29, 8192, %s31, [#allocation9], 256, 256, 16
    $region9: #{tpu_custom_call.1} parent=1 // pred_fallthru
      _
    // Predicated region
    $region10: #{tpu_custom_call.1} parent=1 // pred_check
      _
    $region11: #{tpu_custom_call.1} parent=1 // pred_check_branch
      %38 = sbr.rel (0) target = $region13
    $region12: #{tpu_custom_call.1} parent=1 // pred_region
      %40 = vsyncadd [#allocation9], 0
      %s42 = sshll.u32 %s2, 4
      %s43 = int_to_ptr.hbm [resolvable:$true] %s42
      %s44 = sshll.u32 [#allocation10], 4
      %s45 = int_to_ptr.vmem [resolvable:$true] %s44
      %47 = dma.hbm_to_vmem [thread:$0]  %s43, 64, %s45, [#allocation9]
    $region13: #{tpu_custom_call.1} parent=1 // pred_fallthru
      _
    // Predicated region
    $region14: #{tpu_custom_call.1} parent=1 // pred_check
      _
    $region15: #{tpu_custom_call.1} parent=1 // pred_check_branch
      %49 = sbr.rel (0) target = $region17
    $region16: #{tpu_custom_call.1} parent=1 // pred_region
      %51 = dma.done [#allocation6], 512
    $region17: #{tpu_custom_call.1} parent=1 // pred_fallthru
      _
    // Predicated region
    $region18: #{tpu_custom_call.1} parent=1 // pred_check
      _
    $region19: #{tpu_custom_call.1} parent=1 // pred_check_branch
      %53 = sbr.rel (0) target = $region21
    $region20: #{tpu_custom_call.1} parent=1 // pred_region
      %55 = dma.done [#allocation9], 8192
    $region21: #{tpu_custom_call.1} parent=1 // pred_fallthru
      _
    // Predicated region
    $region22: #{tpu_custom_call.1} parent=1 // pred_check
      _
    $region23: #{tpu_custom_call.1} parent=1 // pred_check_branch
      %57 = sbr.rel (0) target = $region25
    $region24: #{tpu_custom_call.1} parent=1 // pred_region
      %59 = dma.done [#allocation9], 64
    $region25: #{tpu_custom_call.1} parent=1 // pred_fallthru
      _
    %p60 = scmp.eq.s32.totalorder 0, 0
    // Predicated region
    $region26: #{tpu_custom_call.1} parent=1 // pred_check
      %p61 = pneg %p60
    $region27: #{tpu_custom_call.1} parent=1 // pred_check_branch
      %63 = sbr.rel (%p61) target = $region29
    $region28: #{tpu_custom_call.1} parent=1 // pred_region
      %64 = vst [vmem:[#allocation2] sm:$0xff] 0.0
      %65 = vst [vmem:[#allocation3] sm:$0xff] 0.0
    $region29: #{tpu_custom_call.1} parent=1 // pred_fallthru
      _
    %v66 = vld [vmem:[#allocation8] sm:$0xff]
    %v67 = vld [vmem:[#allocation8 + $0x8] sm:$0xff]
    %v68 = vld [vmem:[#allocation8 + $0x10] sm:$0xff]
    %v69 = vld [vmem:[#allocation8 + $0x18] sm:$0xff]
    %v70 = vld [vmem:[#allocation8 + $0x20] sm:$0xff]
    %v71 = vld [vmem:[#allocation8 + $0x28] sm:$0xff]
    %v72 = vld [vmem:[#allocation8 + $0x30] sm:$0xff]
    %v73 = vld [vmem:[#allocation8 + $0x38] sm:$0xff]
    %v74 = vld [vmem:[#allocation8 + $0x40] sm:$0xff]
    %v75 = vld [vmem:[#allocation8 + $0x48] sm:$0xff]
    %v76 = vld [vmem:[#allocation8 + $0x50] sm:$0xff]
    %v77 = vld [vmem:[#allocation8 + $0x58] sm:$0xff]
    %v78 = vld [vmem:[#allocation8 + $0x60] sm:$0xff]
    %v79 = vld [vmem:[#allocation8 + $0x68] sm:$0xff]
    %v80 = vld [vmem:[#allocation8 + $0x70] sm:$0xff]
    %v81 = vld [vmem:[#allocation8 + $0x78] sm:$0xff]
    %v82 = vld [vmem:[#allocation8 + $0x80] sm:$0xff]
    %v83 = vld [vmem:[#allocation8 + $0x88] sm:$0xff]
    %v84 = vld [vmem:[#allocation8 + $0x90] sm:$0xff]
    %v85 = vld [vmem:[#allocation8 + $0x98] sm:$0xff]
    %v86 = vld [vmem:[#allocation8 + $0xa0] sm:$0xff]
    %v87 = vld [vmem:[#allocation8 + $0xa8] sm:$0xff]
    %v88 = vld [vmem:[#allocation8 + $0xb0] sm:$0xff]
    %v89 = vld [vmem:[#allocation8 + $0xb8] sm:$0xff]
    %v90 = vld [vmem:[#allocation8 + $0xc0] sm:$0xff]
    %v91 = vld [vmem:[#allocation8 + $0xc8] sm:$0xff]
    %v92 = vld [vmem:[#allocation8 + $0xd0] sm:$0xff]
    %v93 = vld [vmem:[#allocation8 + $0xd8] sm:$0xff]
    %v94 = vld [vmem:[#allocation8 + $0xe0] sm:$0xff]
    %v95 = vld [vmem:[#allocation8 + $0xe8] sm:$0xff]
    %v96 = vld [vmem:[#allocation8 + $0xf0] sm:$0xff]
    %v97 = vld [vmem:[#allocation8 + $0xf8] sm:$0xff]
    %v98 = vld [vmem:[#allocation8 + $0x100] sm:$0xff]
    %v99 = vld [vmem:[#allocation8 + $0x108] sm:$0xff]
    %v100 = vld [vmem:[#allocation8 + $0x110] sm:$0xff]
    %v101 = vld [vmem:[#allocation8 + $0x118] sm:$0xff]
    %v102 = vld [vmem:[#allocation8 + $0x120] sm:$0xff]
    %v103 = vld [vmem:[#allocation8 + $0x128] sm:$0xff]
    %v104 = vld [vmem:[#allocation8 + $0x130] sm:$0xff]
    %v105 = vld [vmem:[#allocation8 + $0x138] sm:$0xff]
    %v106 = vld [vmem:[#allocation8 + $0x140] sm:$0xff]
    %v107 = vld [vmem:[#allocation8 + $0x148] sm:$0xff]
    %v108 = vld [vmem:[#allocation8 + $0x150] sm:$0xff]
    %v109 = vld [vmem:[#allocation8 + $0x158] sm:$0xff]
    %v110 = vld [vmem:[#allocation8 + $0x160] sm:$0xff]
    %v111 = vld [vmem:[#allocation8 + $0x168] sm:$0xff]
    %v112 = vld [vmem:[#allocation8 + $0x170] sm:$0xff]
    %v113 = vld [vmem:[#allocation8 + $0x178] sm:$0xff]
    %v114 = vld [vmem:[#allocation8 + $0x180] sm:$0xff]
    %v115 = vld [vmem:[#allocation8 + $0x188] sm:$0xff]
    %v116 = vld [vmem:[#allocation8 + $0x190] sm:$0xff]
    %v117 = vld [vmem:[#allocation8 + $0x198] sm:$0xff]
    %v118 = vld [vmem:[#allocation8 + $0x1a0] sm:$0xff]
    %v119 = vld [vmem:[#allocation8 + $0x1a8] sm:$0xff]
    %v120 = vld [vmem:[#allocation8 + $0x1b0] sm:$0xff]
    %v121 = vld [vmem:[#allocation8 + $0x1b8] sm:$0xff]
    %v122 = vld [vmem:[#allocation8 + $0x1c0] sm:$0xff]
    %v123 = vld [vmem:[#allocation8 + $0x1c8] sm:$0xff]
    %v124 = vld [vmem:[#allocation8 + $0x1d0] sm:$0xff]
    %v125 = vld [vmem:[#allocation8 + $0x1d8] sm:$0xff]
    %v126 = vld [vmem:[#allocation8 + $0x1e0] sm:$0xff]
    %v127 = vld [vmem:[#allocation8 + $0x1e8] sm:$0xff]
    %v128 = vld [vmem:[#allocation8 + $0x1f0] sm:$0xff]
    %v129 = vld [vmem:[#allocation8 + $0x1f8] sm:$0xff]
    %v130 = vld [vmem:[#allocation10] sm:$0xf]
    %v132 = vperm.slane %v130, 0
    %v133 = vperm.slane %v130, 1
    %v134 = vperm.slane %v130, 2
    %v135 = vperm.slane %v130, 3
    %v140 = vld [vmem:[#allocation2] sm:$0xff]
    %v141 = vld [vmem:[#allocation3] sm:$0xff]
    %v142 = vld [vmem:[#allocation5] sm:$0xf]
    %143 = vst [vmem:[#allocation4] sm:$0xf] %v142
    %v144 = vpack.c.bf16 %v140, %v140
    %145 = vst [vmem:[#allocation4 + $0x4] sm:$0xf] %v144
    %v146 = vld [vmem:[#allocation4] sm:$0xff]
    %v148 = vunpack.c.l.b16 %v146
    %v149 = vunpack.c.h.b16 %v146
    %v150 = vpack.c.b16 %v148, %v148
    %v151 = vpack.c.b16 %v149, %v149
    %v218 = vunpack.c.l.b16 %v66
    %v219 = vunpack.c.h.b16 %v66
    %v220 = vunpack.c.l.b16 %v67
    %v221 = vunpack.c.h.b16 %v67
    %v222 = vunpack.c.l.b16 %v68
    %v223 = vunpack.c.h.b16 %v68
    %v224 = vunpack.c.l.b16 %v69
    %v225 = vunpack.c.h.b16 %v69
    %v226 = vunpack.c.l.b16 %v70
    %v227 = vunpack.c.h.b16 %v70
    %v228 = vunpack.c.l.b16 %v71
    %v229 = vunpack.c.h.b16 %v71
    %v230 = vunpack.c.l.b16 %v72
    %v231 = vunpack.c.h.b16 %v72
    %v232 = vunpack.c.l.b16 %v73
    %v233 = vunpack.c.h.b16 %v73
    %v234 = vunpack.c.l.b16 %v74
    %v235 = vunpack.c.h.b16 %v74
    %v236 = vunpack.c.l.b16 %v75
    %v237 = vunpack.c.h.b16 %v75
    %v238 = vunpack.c.l.b16 %v76
    %v239 = vunpack.c.h.b16 %v76
    %v240 = vunpack.c.l.b16 %v77
    %v241 = vunpack.c.h.b16 %v77
    %v242 = vunpack.c.l.b16 %v78
    %v243 = vunpack.c.h.b16 %v78
    %v244 = vunpack.c.l.b16 %v79
    %v245 = vunpack.c.h.b16 %v79
    %v246 = vunpack.c.l.b16 %v80
    %v247 = vunpack.c.h.b16 %v80
    %v248 = vunpack.c.l.b16 %v81
    %v249 = vunpack.c.h.b16 %v81
    %v250 = vunpack.c.l.b16 %v82
    %v251 = vunpack.c.h.b16 %v82
    %v252 = vunpack.c.l.b16 %v83
    %v253 = vunpack.c.h.b16 %v83
    %v254 = vunpack.c.l.b16 %v84
    %v255 = vunpack.c.h.b16 %v84
    %v256 = vunpack.c.l.b16 %v85
    %v257 = vunpack.c.h.b16 %v85
    %v258 = vunpack.c.l.b16 %v86
    %v259 = vunpack.c.h.b16 %v86
    %v260 = vunpack.c.l.b16 %v87
    %v261 = vunpack.c.h.b16 %v87
    %v262 = vunpack.c.l.b16 %v88
    %v263 = vunpack.c.h.b16 %v88
    %v264 = vunpack.c.l.b16 %v89
    %v265 = vunpack.c.h.b16 %v89
    %v266 = vunpack.c.l.b16 %v90
    %v267 = vunpack.c.h.b16 %v90
    %v268 = vunpack.c.l.b16 %v91
    %v269 = vunpack.c.h.b16 %v91
    %v270 = vunpack.c.l.b16 %v92
    %v271 = vunpack.c.h.b16 %v92
    %v272 = vunpack.c.l.b16 %v93
    %v273 = vunpack.c.h.b16 %v93
    %v274 = vunpack.c.l.b16 %v94
    %v275 = vunpack.c.h.b16 %v94
    %v276 = vunpack.c.l.b16 %v95
    %v277 = vunpack.c.h.b16 %v95
    %v278 = vunpack.c.l.b16 %v96
    %v279 = vunpack.c.h.b16 %v96
    %v280 = vunpack.c.l.b16 %v97
    %v281 = vunpack.c.h.b16 %v97
    %v282 = vunpack.c.l.b16 %v98
    %v283 = vunpack.c.h.b16 %v98
    %v284 = vunpack.c.l.b16 %v99
    %v285 = vunpack.c.h.b16 %v99
    %v286 = vunpack.c.l.b16 %v100
    %v287 = vunpack.c.h.b16 %v100
    %v288 = vunpack.c.l.b16 %v101
    %v289 = vunpack.c.h.b16 %v101
    %v290 = vunpack.c.l.b16 %v102
    %v291 = vunpack.c.h.b16 %v102
    %v292 = vunpack.c.l.b16 %v103
    %v293 = vunpack.c.h.b16 %v103
    %v294 = vunpack.c.l.b16 %v104
    %v295 = vunpack.c.h.b16 %v104
    %v296 = vunpack.c.l.b16 %v105
    %v297 = vunpack.c.h.b16 %v105
    %v298 = vunpack.c.l.b16 %v106
    %v299 = vunpack.c.h.b16 %v106
    %v300 = vunpack.c.l.b16 %v107
    %v301 = vunpack.c.h.b16 %v107
    %v302 = vunpack.c.l.b16 %v108
    %v303 = vunpack.c.h.b16 %v108
    %v304 = vunpack.c.l.b16 %v109
    %v305 = vunpack.c.h.b16 %v109
    %v306 = vunpack.c.l.b16 %v110
    %v307 = vunpack.c.h.b16 %v110
    %v308 = vunpack.c.l.b16 %v111
    %v309 = vunpack.c.h.b16 %v111
    %v310 = vunpack.c.l.b16 %v112
    %v311 = vunpack.c.h.b16 %v112
    %v312 = vunpack.c.l.b16 %v113
    %v313 = vunpack.c.h.b16 %v113
    %v314 = vunpack.c.l.b16 %v114
    %v315 = vunpack.c.h.b16 %v114
    %v316 = vunpack.c.l.b16 %v115
    %v317 = vunpack.c.h.b16 %v115
    %v318 = vunpack.c.l.b16 %v116
    %v319 = vunpack.c.h.b16 %v116
    %v320 = vunpack.c.l.b16 %v117
    %v321 = vunpack.c.h.b16 %v117
    %v322 = vunpack.c.l.b16 %v118
    %v323 = vunpack.c.h.b16 %v118
    %v324 = vunpack.c.l.b16 %v119
    %v325 = vunpack.c.h.b16 %v119
    %v326 = vunpack.c.l.b16 %v120
    %v327 = vunpack.c.h.b16 %v120
    %v328 = vunpack.c.l.b16 %v121
    %v329 = vunpack.c.h.b16 %v121
    %v330 = vunpack.c.l.b16 %v122
    %v331 = vunpack.c.h.b16 %v122
    %v332 = vunpack.c.l.b16 %v123
    %v333 = vunpack.c.h.b16 %v123
    %v334 = vunpack.c.l.b16 %v124
    %v335 = vunpack.c.h.b16 %v124
    %v336 = vunpack.c.l.b16 %v125
    %v337 = vunpack.c.h.b16 %v125
    %v338 = vunpack.c.l.b16 %v126
    %v339 = vunpack.c.h.b16 %v126
    %v340 = vunpack.c.l.b16 %v127
    %v341 = vunpack.c.h.b16 %v127
    %v342 = vunpack.c.l.b16 %v128
    %v343 = vunpack.c.h.b16 %v128
    %v344 = vunpack.c.l.b16 %v129
    %v345 = vunpack.c.h.b16 %v129
    %v346 = vpack.c.b16 %v222, %v218
    %v347 = vpack.c.b16 %v223, %v219
    %v348 = vpack.c.b16 %v224, %v220
    %v349 = vpack.c.b16 %v225, %v221
    %v350 = vpack.c.b16 %v230, %v226
    %v351 = vpack.c.b16 %v231, %v227
    %v352 = vpack.c.b16 %v232, %v228
    %v353 = vpack.c.b16 %v233, %v229
    %v354 = vpack.c.b16 %v238, %v234
    %v355 = vpack.c.b16 %v239, %v235
    %v356 = vpack.c.b16 %v240, %v236
    %v357 = vpack.c.b16 %v241, %v237
    %v358 = vpack.c.b16 %v246, %v242
    %v359 = vpack.c.b16 %v247, %v243
    %v360 = vpack.c.b16 %v248, %v244
    %v361 = vpack.c.b16 %v249, %v245
    %v362 = vpack.c.b16 %v254, %v250
    %v363 = vpack.c.b16 %v255, %v251
    %v364 = vpack.c.b16 %v256, %v252
    %v365 = vpack.c.b16 %v257, %v253
    %v366 = vpack.c.b16 %v262, %v258
    %v367 = vpack.c.b16 %v263, %v259
    %v368 = vpack.c.b16 %v264, %v260
    %v369 = vpack.c.b16 %v265, %v261
    %v370 = vpack.c.b16 %v270, %v266
    %v371 = vpack.c.b16 %v271, %v267
    %v372 = vpack.c.b16 %v272, %v268
    %v373 = vpack.c.b16 %v273, %v269
    %v374 = vpack.c.b16 %v278, %v274
    %v375 = vpack.c.b16 %v279, %v275
    %v376 = vpack.c.b16 %v280, %v276
    %v377 = vpack.c.b16 %v281, %v277
    %v378 = vpack.c.b16 %v286, %v282
    %v379 = vpack.c.b16 %v287, %v283
    %v380 = vpack.c.b16 %v288, %v284
    %v381 = vpack.c.b16 %v289, %v285
    %v382 = vpack.c.b16 %v294, %v290
    %v383 = vpack.c.b16 %v295, %v291
    %v384 = vpack.c.b16 %v296, %v292
    %v385 = vpack.c.b16 %v297, %v293
    %v386 = vpack.c.b16 %v302, %v298
    %v387 = vpack.c.b16 %v303, %v299
    %v388 = vpack.c.b16 %v304, %v300
    %v389 = vpack.c.b16 %v305, %v301
    %v390 = vpack.c.b16 %v310, %v306
    %v391 = vpack.c.b16 %v311, %v307
    %v392 = vpack.c.b16 %v312, %v308
    %v393 = vpack.c.b16 %v313, %v309
    %v394 = vpack.c.b16 %v318, %v314
    %v395 = vpack.c.b16 %v319, %v315
    %v396 = vpack.c.b16 %v320, %v316
    %v397 = vpack.c.b16 %v321, %v317
    %v398 = vpack.c.b16 %v326, %v322
    %v399 = vpack.c.b16 %v327, %v323
    %v400 = vpack.c.b16 %v328, %v324
    %v401 = vpack.c.b16 %v329, %v325
    %v402 = vpack.c.b16 %v334, %v330
    %v403 = vpack.c.b16 %v335, %v331
    %v404 = vpack.c.b16 %v336, %v332
    %v405 = vpack.c.b16 %v337, %v333
    %v406 = vpack.c.b16 %v342, %v338
    %v407 = vpack.c.b16 %v343, %v339
    %v408 = vpack.c.b16 %v344, %v340
    %v409 = vpack.c.b16 %v345, %v341
    %474 = vmatpush.bf16.msra.mxu0 %v374
    %475 = vmatpush.bf16.msra.mxu0 %v370
    %476 = vmatpush.bf16.msra.mxu0 %v366
    %477 = vmatpush.bf16.msra.mxu0 %v362
    %478 = vmatpush.bf16.msra.mxu0 %v358
    %479 = vmatpush.bf16.msra.mxu0 %v354
    %480 = vmatpush.bf16.msra.mxu0 %v350
    %481 = vmatpush.bf16.msra.mxu0 %v346
    %482 = vmatmul.bf16.gmra.mxu0 %v150
    %v483 = vpop.f32.mrf.mxu0
    %v484 = vadd.f32 %v132, %v483
    %v485 = vpop.f32.mrf.mxu0
    %486 = vdwg.mxu0
    %487 = vmatpush.bf16.msra.mxu0 %v406
    %488 = vmatpush.bf16.msra.mxu0 %v402
    %489 = vmatpush.bf16.msra.mxu0 %v398
    %490 = vmatpush.bf16.msra.mxu0 %v394
    %491 = vmatpush.bf16.msra.mxu0 %v390
    %492 = vmatpush.bf16.msra.mxu0 %v386
    %493 = vmatpush.bf16.msra.mxu0 %v382
    %494 = vmatpush.bf16.msra.mxu0 %v378
    %495 = vmatmul.bf16.gmra.mxu0 %v151
    %v496 = vpop.f32.mrf.mxu0
    %v497 = vadd.f32 %v484, %v496
    %v498 = vpop.f32.mrf.mxu0
    %499 = vdwg.mxu0
    %500 = vmatpush.bf16.msra.mxu0 %v375
    %501 = vmatpush.bf16.msra.mxu0 %v371
    %502 = vmatpush.bf16.msra.mxu0 %v367
    %503 = vmatpush.bf16.msra.mxu0 %v363
    %504 = vmatpush.bf16.msra.mxu0 %v359
    %505 = vmatpush.bf16.msra.mxu0 %v355
    %506 = vmatpush.bf16.msra.mxu0 %v351
    %507 = vmatpush.bf16.msra.mxu0 %v347
    %508 = vmatmul.bf16.gmra.mxu0 %v150
    %v509 = vpop.f32.mrf.mxu0
    %v510 = vadd.f32 %v133, %v509
    %v511 = vpop.f32.mrf.mxu0
    %512 = vdwg.mxu0
    %513 = vmatpush.bf16.msra.mxu0 %v407
    %514 = vmatpush.bf16.msra.mxu0 %v403
    %515 = vmatpush.bf16.msra.mxu0 %v399
    %516 = vmatpush.bf16.msra.mxu0 %v395
    %517 = vmatpush.bf16.msra.mxu0 %v391
    %518 = vmatpush.bf16.msra.mxu0 %v387
    %519 = vmatpush.bf16.msra.mxu0 %v383
    %520 = vmatpush.bf16.msra.mxu0 %v379
    %521 = vmatmul.bf16.gmra.mxu0 %v151
    %v522 = vpop.f32.mrf.mxu0
    %v523 = vadd.f32 %v510, %v522
    %v524 = vpop.f32.mrf.mxu0
    %525 = vdwg.mxu0
    %526 = vmatpush.bf16.msra.mxu0 %v376
    %527 = vmatpush.bf16.msra.mxu0 %v372
    %528 = vmatpush.bf16.msra.mxu0 %v368
    %529 = vmatpush.bf16.msra.mxu0 %v364
    %530 = vmatpush.bf16.msra.mxu0 %v360
    %531 = vmatpush.bf16.msra.mxu0 %v356
    %532 = vmatpush.bf16.msra.mxu0 %v352
    %533 = vmatpush.bf16.msra.mxu0 %v348
    %534 = vmatmul.bf16.gmra.mxu0 %v150
    %v535 = vpop.f32.mrf.mxu0
    %v536 = vadd.f32 %v134, %v535
    %v537 = vpop.f32.mrf.mxu0
    %538 = vdwg.mxu0
    %539 = vmatpush.bf16.msra.mxu0 %v408
    %540 = vmatpush.bf16.msra.mxu0 %v404
    %541 = vmatpush.bf16.msra.mxu0 %v400
    %542 = vmatpush.bf16.msra.mxu0 %v396
    %543 = vmatpush.bf16.msra.mxu0 %v392
    %544 = vmatpush.bf16.msra.mxu0 %v388
    %545 = vmatpush.bf16.msra.mxu0 %v384
    %546 = vmatpush.bf16.msra.mxu0 %v380
    %547 = vmatmul.bf16.gmra.mxu0 %v151
    %v548 = vpop.f32.mrf.mxu0
    %v549 = vadd.f32 %v536, %v548
    %v550 = vpop.f32.mrf.mxu0
    %551 = vdwg.mxu0
    %552 = vmatpush.bf16.msra.mxu0 %v377
    %553 = vmatpush.bf16.msra.mxu0 %v373
    %554 = vmatpush.bf16.msra.mxu0 %v369
    %555 = vmatpush.bf16.msra.mxu0 %v365
    %556 = vmatpush.bf16.msra.mxu0 %v361
    %557 = vmatpush.bf16.msra.mxu0 %v357
    %558 = vmatpush.bf16.msra.mxu0 %v353
    %559 = vmatpush.bf16.msra.mxu0 %v349
    %560 = vmatmul.bf16.gmra.mxu0 %v150
    %v561 = vpop.f32.mrf.mxu0
    %v562 = vadd.f32 %v135, %v561
    %v563 = vpop.f32.mrf.mxu0
    %564 = vdwg.mxu0
    %565 = vmatpush.bf16.msra.mxu0 %v409
    %566 = vmatpush.bf16.msra.mxu0 %v405
    %567 = vmatpush.bf16.msra.mxu0 %v401
    %568 = vmatpush.bf16.msra.mxu0 %v397
    %569 = vmatpush.bf16.msra.mxu0 %v393
    %570 = vmatpush.bf16.msra.mxu0 %v389
    %571 = vmatpush.bf16.msra.mxu0 %v385
    %572 = vmatpush.bf16.msra.mxu0 %v381
    %573 = vmatmul.bf16.gmra.mxu0 %v151
    %v574 = vpop.f32.mrf.mxu0
    %v575 = vadd.f32 %v562, %v574
    %v576 = vpop.f32.mrf.mxu0
    %577 = vdwg.mxu0
    %v578 = vxor.u32 %v497, 2147483648
    %v579 = vmul.f32 %v578, 1.442695
    %v580 = vpow.pop %v579
    %v581 = vadd.f32 %v580, 1.0
    %v582 = vrcp.pop %v581
    %v583 = vmul.f32 %v581, %v582
    %v584 = vsub.f32 1.0, %v583
    %v585 = vmul.f32 %v582, %v584
    %v586 = vadd.f32 %v582, %v585
    %vm587 = vweird.f32 %v581
    %vm588 = vweird.f32 %v582
    %vm589 = vmor %vm587, %vm588
    %v590 = vsel %vm589, %v582, %v586
    %v591 = vand.u32 2147483647, %v581
    %vm592 = vcmp.eq.f32.partialorder %v591, 8.507059e+37
    %v593 = vand.u32 %v581, 2147483648
    %v594 = vor.u32 1.1754944e-38, %v593
    %v595 = vsel %vm592, %v594, %v590
    %v596 = vmul.f32 1.0, %v595
    %v597 = vxor.u32 %v523, 2147483648
    %v598 = vmul.f32 %v597, 1.442695
    %v599 = vpow.pop %v598
    %v600 = vadd.f32 %v599, 1.0
    %v601 = vrcp.pop %v600
    %v602 = vmul.f32 %v600, %v601
    %v603 = vsub.f32 1.0, %v602
    %v604 = vmul.f32 %v601, %v603
    %v605 = vadd.f32 %v601, %v604
    %vm606 = vweird.f32 %v600
    %vm607 = vweird.f32 %v601
    %vm608 = vmor %vm606, %vm607
    %v609 = vsel %vm608, %v601, %v605
    %v610 = vand.u32 2147483647, %v600
    %vm611 = vcmp.eq.f32.partialorder %v610, 8.507059e+37
    %v612 = vand.u32 %v600, 2147483648
    %v613 = vor.u32 1.1754944e-38, %v612
    %v614 = vsel %vm611, %v613, %v609
    %v615 = vmul.f32 1.0, %v614
    %v616 = vtanh.pop %v549
    %v617 = vxor.u32 %v575, 2147483648
    %v618 = vmul.f32 %v617, 1.442695
    %v619 = vpow.pop %v618
    %v620 = vadd.f32 %v619, 1.0
    %v621 = vrcp.pop %v620
    %v622 = vmul.f32 %v620, %v621
    %v623 = vsub.f32 1.0, %v622
    %v624 = vmul.f32 %v621, %v623
    %v625 = vadd.f32 %v621, %v624
    %vm626 = vweird.f32 %v620
    %vm627 = vweird.f32 %v621
    %vm628 = vmor %vm626, %vm627
    %v629 = vsel %vm628, %v621, %v625
    %v630 = vand.u32 2147483647, %v620
    %vm631 = vcmp.eq.f32.partialorder %v630, 8.507059e+37
    %v632 = vand.u32 %v620, 2147483648
    %v633 = vor.u32 1.1754944e-38, %v632
    %v634 = vsel %vm631, %v633, %v629
    %v635 = vmul.f32 1.0, %v634
    %v636 = vmul.f32 %v615, %v141
    %v637 = vmul.f32 %v596, %v616
    %v638 = vadd.f32 %v636, %v637
    %v639 = vtanh.pop %v638
    %v640 = vmul.f32 %v635, %v639
    %s641 = scalar_lea.vmem [#allocation5], 4
    %v642 = vld [vmem:[%s641] sm:$0xf]
    %643 = vst [vmem:[#allocation4] sm:$0xf] %v642
    %v644 = vpack.c.bf16 %v640, %v640
    %645 = vst [vmem:[#allocation4 + $0x4] sm:$0xf] %v644
    %v646 = vld [vmem:[#allocation4] sm:$0xff]
    %v648 = vunpack.c.l.b16 %v646
    %v649 = vunpack.c.h.b16 %v646
    %v650 = vpack.c.b16 %v648, %v648
    %v651 = vpack.c.b16 %v649, %v649
    %654 = vmatpush.bf16.msra.mxu0 %v374
    %655 = vmatpush.bf16.msra.mxu0 %v370
    %656 = vmatpush.bf16.msra.mxu0 %v366
    %657 = vmatpush.bf16.msra.mxu0 %v362
    %658 = vmatpush.bf16.msra.mxu0 %v358
    %659 = vmatpush.bf16.msra.mxu0 %v354
    %660 = vmatpush.bf16.msra.mxu0 %v350
    %661 = vmatpush.bf16.msra.mxu0 %v346
    %662 = vmatmul.bf16.gmra.mxu0 %v650
    %v663 = vpop.f32.mrf.mxu0
    %v664 = vadd.f32 %v132, %v663
    %v665 = vpop.f32.mrf.mxu0
    %666 = vdwg.mxu0
    %667 = vmatpush.bf16.msra.mxu0 %v406
    %668 = vmatpush.bf16.msra.mxu0 %v402
    %669 = vmatpush.bf16.msra.mxu0 %v398
    %670 = vmatpush.bf16.msra.mxu0 %v394
    %671 = vmatpush.bf16.msra.mxu0 %v390
    %672 = vmatpush.bf16.msra.mxu0 %v386
    %673 = vmatpush.bf16.msra.mxu0 %v382
    %674 = vmatpush.bf16.msra.mxu0 %v378
    %675 = vmatmul.bf16.gmra.mxu0 %v651
    %v676 = vpop.f32.mrf.mxu0
    %v677 = vadd.f32 %v664, %v676
    %v678 = vpop.f32.mrf.mxu0
    %679 = vdwg.mxu0
    %680 = vmatpush.bf16.msra.mxu0 %v375
    %681 = vmatpush.bf16.msra.mxu0 %v371
    %682 = vmatpush.bf16.msra.mxu0 %v367
    %683 = vmatpush.bf16.msra.mxu0 %v363
    %684 = vmatpush.bf16.msra.mxu0 %v359
    %685 = vmatpush.bf16.msra.mxu0 %v355
    %686 = vmatpush.bf16.msra.mxu0 %v351
    %687 = vmatpush.bf16.msra.mxu0 %v347
    %688 = vmatmul.bf16.gmra.mxu0 %v650
    %v689 = vpop.f32.mrf.mxu0
    %v690 = vadd.f32 %v133, %v689
    %v691 = vpop.f32.mrf.mxu0
    %692 = vdwg.mxu0
    %693 = vmatpush.bf16.msra.mxu0 %v407
    %694 = vmatpush.bf16.msra.mxu0 %v403
    %695 = vmatpush.bf16.msra.mxu0 %v399
    %696 = vmatpush.bf16.msra.mxu0 %v395
    %697 = vmatpush.bf16.msra.mxu0 %v391
    %698 = vmatpush.bf16.msra.mxu0 %v387
    %699 = vmatpush.bf16.msra.mxu0 %v383
    %700 = vmatpush.bf16.msra.mxu0 %v379
    %701 = vmatmul.bf16.gmra.mxu0 %v651
    %v702 = vpop.f32.mrf.mxu0
    %v703 = vadd.f32 %v690, %v702
    %v704 = vpop.f32.mrf.mxu0
    %705 = vdwg.mxu0
    %706 = vmatpush.bf16.msra.mxu0 %v376
    %707 = vmatpush.bf16.msra.mxu0 %v372
    %708 = vmatpush.bf16.msra.mxu0 %v368
    %709 = vmatpush.bf16.msra.mxu0 %v364
    %710 = vmatpush.bf16.msra.mxu0 %v360
    %711 = vmatpush.bf16.msra.mxu0 %v356
    %712 = vmatpush.bf16.msra.mxu0 %v352
    %713 = vmatpush.bf16.msra.mxu0 %v348
    %714 = vmatmul.bf16.gmra.mxu0 %v650
    %v715 = vpop.f32.mrf.mxu0
    %v716 = vadd.f32 %v134, %v715
    %v717 = vpop.f32.mrf.mxu0
    %718 = vdwg.mxu0
    %719 = vmatpush.bf16.msra.mxu0 %v408
    %720 = vmatpush.bf16.msra.mxu0 %v404
    %721 = vmatpush.bf16.msra.mxu0 %v400
    %722 = vmatpush.bf16.msra.mxu0 %v396
    %723 = vmatpush.bf16.msra.mxu0 %v392
    %724 = vmatpush.bf16.msra.mxu0 %v388
    %725 = vmatpush.bf16.msra.mxu0 %v384
    %726 = vmatpush.bf16.msra.mxu0 %v380
    %727 = vmatmul.bf16.gmra.mxu0 %v651
    %v728 = vpop.f32.mrf.mxu0
    %v729 = vadd.f32 %v716, %v728
    %v730 = vpop.f32.mrf.mxu0
    %731 = vdwg.mxu0
    %732 = vmatpush.bf16.msra.mxu0 %v377
    %733 = vmatpush.bf16.msra.mxu0 %v373
    %734 = vmatpush.bf16.msra.mxu0 %v369
    %735 = vmatpush.bf16.msra.mxu0 %v365
    %736 = vmatpush.bf16.msra.mxu0 %v361
    %737 = vmatpush.bf16.msra.mxu0 %v357
    %738 = vmatpush.bf16.msra.mxu0 %v353
    %739 = vmatpush.bf16.msra.mxu0 %v349
    %740 = vmatmul.bf16.gmra.mxu0 %v650
    %v741 = vpop.f32.mrf.mxu0
    %v742 = vadd.f32 %v135, %v741
    %v743 = vpop.f32.mrf.mxu0
    %744 = vdwg.mxu0
    %745 = vmatpush.bf16.msra.mxu0 %v409
    %746 = vmatpush.bf16.msra.mxu0 %v405
    %747 = vmatpush.bf16.msra.mxu0 %v401
    %748 = vmatpush.bf16.msra.mxu0 %v397
    %749 = vmatpush.bf16.msra.mxu0 %v393
    %750 = vmatpush.bf16.msra.mxu0 %v389
    %751 = vmatpush.bf16.msra.mxu0 %v385
    %752 = vmatpush.bf16.msra.mxu0 %v381
    %753 = vmatmul.bf16.gmra.mxu0 %v651
    %v754 = vpop.f32.mrf.mxu0
    %v755 = vadd.f32 %v742, %v754
    %v756 = vpop.f32.mrf.mxu0
    %757 = vdwg.mxu0
    %v758 = vxor.u32 %v677, 2147483648
    %v759 = vmul.f32 %v758, 1.442695
    %v760 = vpow.pop %v759
    %v761 = vadd.f32 %v760, 1.0
    %v762 = vrcp.pop %v761
    %v763 = vmul.f32 %v761, %v762
    %v764 = vsub.f32 1.0, %v763
    %v765 = vmul.f32 %v762, %v764
    %v766 = vadd.f32 %v762, %v765
    %vm767 = vweird.f32 %v761
    %vm768 = vweird.f32 %v762
    %vm769 = vmor %vm767, %vm768
    %v770 = vsel %vm769, %v762, %v766
    %v771 = vand.u32 2147483647, %v761
    %vm772 = vcmp.eq.f32.partialorder %v771, 8.507059e+37
    %v773 = vand.u32 %v761, 2147483648
    %v774 = vor.u32 1.1754944e-38, %v773
    %v775 = vsel %vm772, %v774, %v770
    %v776 = vmul.f32 1.0, %v775
    %v777 = vxor.u32 %v703, 2147483648
    %v778 = vmul.f32 %v777, 1.442695
    %v779 = vpow.pop %v778
    %v780 = vadd.f32 %v779, 1.0
    %v781 = vrcp.pop %v780
    %v782 = vmul.f32 %v780, %v781
    %v783 = vsub.f32 1.0, %v782
    %v784 = vmul.f32 %v781, %v783
    %v785 = vadd.f32 %v781, %v784
    %vm786 = vweird.f32 %v780
    %vm787 = vweird.f32 %v781
    %vm788 = vmor %vm786, %vm787
    %v789 = vsel %vm788, %v781, %v785
    %v790 = vand.u32 2147483647, %v780
    %vm791 = vcmp.eq.f32.partialorder %v790, 8.507059e+37
    %v792 = vand.u32 %v780, 2147483648
    %v793 = vor.u32 1.1754944e-38, %v792
    %v794 = vsel %vm791, %v793, %v789
    %v795 = vmul.f32 1.0, %v794
    %v796 = vtanh.pop %v729
    %v797 = vxor.u32 %v755, 2147483648
    %v798 = vmul.f32 %v797, 1.442695
    %v799 = vpow.pop %v798
    %v800 = vadd.f32 %v799, 1.0
    %v801 = vrcp.pop %v800
    %v802 = vmul.f32 %v800, %v801
    %v803 = vsub.f32 1.0, %v802
    %v804 = vmul.f32 %v801, %v803
    %v805 = vadd.f32 %v801, %v804
    %vm806 = vweird.f32 %v800
    %vm807 = vweird.f32 %v801
    %vm808 = vmor %vm806, %vm807
    %v809 = vsel %vm808, %v801, %v805
    %v810 = vand.u32 2147483647, %v800
    %vm811 = vcmp.eq.f32.partialorder %v810, 8.507059e+37
    %v812 = vand.u32 %v800, 2147483648
    %v813 = vor.u32 1.1754944e-38, %v812
    %v814 = vsel %vm811, %v813, %v809
    %v815 = vmul.f32 1.0, %v814
    %v816 = vmul.f32 %v795, %v638
    %v817 = vmul.f32 %v776, %v796
    %v818 = vadd.f32 %v816, %v817
    %v819 = vtanh.pop %v818
    %v820 = vmul.f32 %v815, %v819
    %s821 = scalar_lea.vmem [#allocation5], 8
    %v822 = vld [vmem:[%s821] sm:$0xf]
    %823 = vst [vmem:[#allocation4] sm:$0xf] %v822
    %v824 = vpack.c.bf16 %v820, %v820
    %825 = vst [vmem:[#allocation4 + $0x4] sm:$0xf] %v824
    %v826 = vld [vmem:[#allocation4] sm:$0xff]
    %v828 = vunpack.c.l.b16 %v826
    %v829 = vunpack.c.h.b16 %v826
    %v830 = vpack.c.b16 %v828, %v828
    %v831 = vpack.c.b16 %v829, %v829
    %834 = vmatpush.bf16.msra.mxu0 %v374
    %835 = vmatpush.bf16.msra.mxu0 %v370
    %836 = vmatpush.bf16.msra.mxu0 %v366
    %837 = vmatpush.bf16.msra.mxu0 %v362
    %838 = vmatpush.bf16.msra.mxu0 %v358
    %839 = vmatpush.bf16.msra.mxu0 %v354
    %840 = vmatpush.bf16.msra.mxu0 %v350
    %841 = vmatpush.bf16.msra.mxu0 %v346
    %842 = vmatmul.bf16.gmra.mxu0 %v830
    %v843 = vpop.f32.mrf.mxu0
    %v844 = vadd.f32 %v132, %v843
    %v845 = vpop.f32.mrf.mxu0
    %846 = vdwg.mxu0
    %847 = vmatpush.bf16.msra.mxu0 %v406
    %848 = vmatpush.bf16.msra.mxu0 %v402
    %849 = vmatpush.bf16.msra.mxu0 %v398
    %850 = vmatpush.bf16.msra.mxu0 %v394
    %851 = vmatpush.bf16.msra.mxu0 %v390
    %852 = vmatpush.bf16.msra.mxu0 %v386
    %853 = vmatpush.bf16.msra.mxu0 %v382
    %854 = vmatpush.bf16.msra.mxu0 %v378
    %855 = vmatmul.bf16.gmra.mxu0 %v831
    %v856 = vpop.f32.mrf.mxu0
    %v857 = vadd.f32 %v844, %v856
    %v858 = vpop.f32.mrf.mxu0
    %859 = vdwg.mxu0
    %860 = vmatpush.bf16.msra.mxu0 %v375
    %861 = vmatpush.bf16.msra.mxu0 %v371
    %862 = vmatpush.bf16.msra.mxu0 %v367
    %863 = vmatpush.bf16.msra.mxu0 %v363
    %864 = vmatpush.bf16.msra.mxu0 %v359
    %865 = vmatpush.bf16.msra.mxu0 %v355
    %866 = vmatpush.bf16.msra.mxu0 %v351
    %867 = vmatpush.bf16.msra.mxu0 %v347
    %868 = vmatmul.bf16.gmra.mxu0 %v830
    %v869 = vpop.f32.mrf.mxu0
    %v870 = vadd.f32 %v133, %v869
    %v871 = vpop.f32.mrf.mxu0
    %872 = vdwg.mxu0
    %873 = vmatpush.bf16.msra.mxu0 %v407
    %874 = vmatpush.bf16.msra.mxu0 %v403
    %875 = vmatpush.bf16.msra.mxu0 %v399
    %876 = vmatpush.bf16.msra.mxu0 %v395
    %877 = vmatpush.bf16.msra.mxu0 %v391
    %878 = vmatpush.bf16.msra.mxu0 %v387
    %879 = vmatpush.bf16.msra.mxu0 %v383
    %880 = vmatpush.bf16.msra.mxu0 %v379
    %881 = vmatmul.bf16.gmra.mxu0 %v831
    %v882 = vpop.f32.mrf.mxu0
    %v883 = vadd.f32 %v870, %v882
    %v884 = vpop.f32.mrf.mxu0
    %885 = vdwg.mxu0
    %886 = vmatpush.bf16.msra.mxu0 %v376
    %887 = vmatpush.bf16.msra.mxu0 %v372
    %888 = vmatpush.bf16.msra.mxu0 %v368
    %889 = vmatpush.bf16.msra.mxu0 %v364
    %890 = vmatpush.bf16.msra.mxu0 %v360
    %891 = vmatpush.bf16.msra.mxu0 %v356
    %892 = vmatpush.bf16.msra.mxu0 %v352
    %893 = vmatpush.bf16.msra.mxu0 %v348
    %894 = vmatmul.bf16.gmra.mxu0 %v830
    %v895 = vpop.f32.mrf.mxu0
    %v896 = vadd.f32 %v134, %v895
    %v897 = vpop.f32.mrf.mxu0
    %898 = vdwg.mxu0
    %899 = vmatpush.bf16.msra.mxu0 %v408
    %900 = vmatpush.bf16.msra.mxu0 %v404
    %901 = vmatpush.bf16.msra.mxu0 %v400
    %902 = vmatpush.bf16.msra.mxu0 %v396
    %903 = vmatpush.bf16.msra.mxu0 %v392
    %904 = vmatpush.bf16.msra.mxu0 %v388
    %905 = vmatpush.bf16.msra.mxu0 %v384
    %906 = vmatpush.bf16.msra.mxu0 %v380
    %907 = vmatmul.bf16.gmra.mxu0 %v831
    %v908 = vpop.f32.mrf.mxu0
    %v909 = vadd.f32 %v896, %v908
    %v910 = vpop.f32.mrf.mxu0
    %911 = vdwg.mxu0
    %912 = vmatpush.bf16.msra.mxu0 %v377
    %913 = vmatpush.bf16.msra.mxu0 %v373
    %914 = vmatpush.bf16.msra.mxu0 %v369
    %915 = vmatpush.bf16.msra.mxu0 %v365
    %916 = vmatpush.bf16.msra.mxu0 %v361
    %917 = vmatpush.bf16.msra.mxu0 %v357
    %918 = vmatpush.bf16.msra.mxu0 %v353
    %919 = vmatpush.bf16.msra.mxu0 %v349
    %920 = vmatmul.bf16.gmra.mxu0 %v830
    %v921 = vpop.f32.mrf.mxu0
    %v922 = vadd.f32 %v135, %v921
    %v923 = vpop.f32.mrf.mxu0
    %924 = vdwg.mxu0
    %925 = vmatpush.bf16.msra.mxu0 %v409
    %926 = vmatpush.bf16.msra.mxu0 %v405
    %927 = vmatpush.bf16.msra.mxu0 %v401
    %928 = vmatpush.bf16.msra.mxu0 %v397
    %929 = vmatpush.bf16.msra.mxu0 %v393
    %930 = vmatpush.bf16.msra.mxu0 %v389
    %931 = vmatpush.bf16.msra.mxu0 %v385
    %932 = vmatpush.bf16.msra.mxu0 %v381
    %933 = vmatmul.bf16.gmra.mxu0 %v831
    %v934 = vpop.f32.mrf.mxu0
    %v935 = vadd.f32 %v922, %v934
    %v936 = vpop.f32.mrf.mxu0
    %937 = vdwg.mxu0
    %v938 = vxor.u32 %v857, 2147483648
    %v939 = vmul.f32 %v938, 1.442695
    %v940 = vpow.pop %v939
    %v941 = vadd.f32 %v940, 1.0
    %v942 = vrcp.pop %v941
    %v943 = vmul.f32 %v941, %v942
    %v944 = vsub.f32 1.0, %v943
    %v945 = vmul.f32 %v942, %v944
    %v946 = vadd.f32 %v942, %v945
    %vm947 = vweird.f32 %v941
    %vm948 = vweird.f32 %v942
    %vm949 = vmor %vm947, %vm948
    %v950 = vsel %vm949, %v942, %v946
    %v951 = vand.u32 2147483647, %v941
    %vm952 = vcmp.eq.f32.partialorder %v951, 8.507059e+37
    %v953 = vand.u32 %v941, 2147483648
    %v954 = vor.u32 1.1754944e-38, %v953
    %v955 = vsel %vm952, %v954, %v950
    %v956 = vmul.f32 1.0, %v955
    %v957 = vxor.u32 %v883, 2147483648
    %v958 = vmul.f32 %v957, 1.442695
    %v959 = vpow.pop %v958
    %v960 = vadd.f32 %v959, 1.0
    %v961 = vrcp.pop %v960
    %v962 = vmul.f32 %v960, %v961
    %v963 = vsub.f32 1.0, %v962
    %v964 = vmul.f32 %v961, %v963
    %v965 = vadd.f32 %v961, %v964
    %vm966 = vweird.f32 %v960
    %vm967 = vweird.f32 %v961
    %vm968 = vmor %vm966, %vm967
    %v969 = vsel %vm968, %v961, %v965
    %v970 = vand.u32 2147483647, %v960
    %vm971 = vcmp.eq.f32.partialorder %v970, 8.507059e+37
    %v972 = vand.u32 %v960, 2147483648
    %v973 = vor.u32 1.1754944e-38, %v972
    %v974 = vsel %vm971, %v973, %v969
    %v975 = vmul.f32 1.0, %v974
    %v976 = vtanh.pop %v909
    %v977 = vxor.u32 %v935, 2147483648
    %v978 = vmul.f32 %v977, 1.442695
    %v979 = vpow.pop %v978
    %v980 = vadd.f32 %v979, 1.0
    %v981 = vrcp.pop %v980
    %v982 = vmul.f32 %v980, %v981
    %v983 = vsub.f32 1.0, %v982
    %v984 = vmul.f32 %v981, %v983
    %v985 = vadd.f32 %v981, %v984
    %vm986 = vweird.f32 %v980
    %vm987 = vweird.f32 %v981
    %vm988 = vmor %vm986, %vm987
    %v989 = vsel %vm988, %v981, %v985
    %v990 = vand.u32 2147483647, %v980
    %vm991 = vcmp.eq.f32.partialorder %v990, 8.507059e+37
    %v992 = vand.u32 %v980, 2147483648
    %v993 = vor.u32 1.1754944e-38, %v992
    %v994 = vsel %vm991, %v993, %v989
    %v995 = vmul.f32 1.0, %v994
    %v996 = vmul.f32 %v975, %v818
    %v997 = vmul.f32 %v956, %v976
    %v998 = vadd.f32 %v996, %v997
    %v999 = vtanh.pop %v998
    %v1000 = vmul.f32 %v995, %v999
    %s1001 = scalar_lea.vmem [#allocation5], 12
    %v1002 = vld [vmem:[%s1001] sm:$0xf]
    %1003 = vst [vmem:[#allocation4] sm:$0xf] %v1002
    %v1004 = vpack.c.bf16 %v1000, %v1000
    %1005 = vst [vmem:[#allocation4 + $0x4] sm:$0xf] %v1004
    %v1006 = vld [vmem:[#allocation4] sm:$0xff]
    %v1008 = vunpack.c.l.b16 %v1006
    %v1009 = vunpack.c.h.b16 %v1006
    %v1010 = vpack.c.b16 %v1008, %v1008
    %v1011 = vpack.c.b16 %v1009, %v1009
    %1014 = vmatpush.bf16.msra.mxu0 %v374
    %1015 = vmatpush.bf16.msra.mxu0 %v370
    %1016 = vmatpush.bf16.msra.mxu0 %v366
    %1017 = vmatpush.bf16.msra.mxu0 %v362
    %1018 = vmatpush.bf16.msra.mxu0 %v358
    %1019 = vmatpush.bf16.msra.mxu0 %v354
    %1020 = vmatpush.bf16.msra.mxu0 %v350
    %1021 = vmatpush.bf16.msra.mxu0 %v346
    %1022 = vmatmul.bf16.gmra.mxu0 %v1010
    %v1023 = vpop.f32.mrf.mxu0
    %v1024 = vadd.f32 %v132, %v1023
    %v1025 = vpop.f32.mrf.mxu0
    %1026 = vdwg.mxu0
    %1027 = vmatpush.bf16.msra.mxu0 %v406
    %1028 = vmatpush.bf16.msra.mxu0 %v402
    %1029 = vmatpush.bf16.msra.mxu0 %v398
    %1030 = vmatpush.bf16.msra.mxu0 %v394
    %1031 = vmatpush.bf16.msra.mxu0 %v390
    %1032 = vmatpush.bf16.msra.mxu0 %v386
    %1033 = vmatpush.bf16.msra.mxu0 %v382
    %1034 = vmatpush.bf16.msra.mxu0 %v378
    %1035 = vmatmul.bf16.gmra.mxu0 %v1011
    %v1036 = vpop.f32.mrf.mxu0
    %v1037 = vadd.f32 %v1024, %v1036
    %v1038 = vpop.f32.mrf.mxu0
    %1039 = vdwg.mxu0
    %1040 = vmatpush.bf16.msra.mxu0 %v375
    %1041 = vmatpush.bf16.msra.mxu0 %v371
    %1042 = vmatpush.bf16.msra.mxu0 %v367
    %1043 = vmatpush.bf16.msra.mxu0 %v363
    %1044 = vmatpush.bf16.msra.mxu0 %v359
    %1045 = vmatpush.bf16.msra.mxu0 %v355
    %1046 = vmatpush.bf16.msra.mxu0 %v351
    %1047 = vmatpush.bf16.msra.mxu0 %v347
    %1048 = vmatmul.bf16.gmra.mxu0 %v1010
    %v1049 = vpop.f32.mrf.mxu0
    %v1050 = vadd.f32 %v133, %v1049
    %v1051 = vpop.f32.mrf.mxu0
    %1052 = vdwg.mxu0
    %1053 = vmatpush.bf16.msra.mxu0 %v407
    %1054 = vmatpush.bf16.msra.mxu0 %v403
    %1055 = vmatpush.bf16.msra.mxu0 %v399
    %1056 = vmatpush.bf16.msra.mxu0 %v395
    %1057 = vmatpush.bf16.msra.mxu0 %v391
    %1058 = vmatpush.bf16.msra.mxu0 %v387
    %1059 = vmatpush.bf16.msra.mxu0 %v383
    %1060 = vmatpush.bf16.msra.mxu0 %v379
    %1061 = vmatmul.bf16.gmra.mxu0 %v1011
    %v1062 = vpop.f32.mrf.mxu0
    %v1063 = vadd.f32 %v1050, %v1062
    %v1064 = vpop.f32.mrf.mxu0
    %1065 = vdwg.mxu0
    %1066 = vmatpush.bf16.msra.mxu0 %v376
    %1067 = vmatpush.bf16.msra.mxu0 %v372
    %1068 = vmatpush.bf16.msra.mxu0 %v368
    %1069 = vmatpush.bf16.msra.mxu0 %v364
    %1070 = vmatpush.bf16.msra.mxu0 %v360
    %1071 = vmatpush.bf16.msra.mxu0 %v356
    %1072 = vmatpush.bf16.msra.mxu0 %v352
    %1073 = vmatpush.bf16.msra.mxu0 %v348
    %1074 = vmatmul.bf16.gmra.mxu0 %v1010
    %v1075 = vpop.f32.mrf.mxu0
    %v1076 = vadd.f32 %v134, %v1075
    %v1077 = vpop.f32.mrf.mxu0
    %1078 = vdwg.mxu0
    %1079 = vmatpush.bf16.msra.mxu0 %v408
    %1080 = vmatpush.bf16.msra.mxu0 %v404
    %1081 = vmatpush.bf16.msra.mxu0 %v400
    %1082 = vmatpush.bf16.msra.mxu0 %v396
    %1083 = vmatpush.bf16.msra.mxu0 %v392
    %1084 = vmatpush.bf16.msra.mxu0 %v388
    %1085 = vmatpush.bf16.msra.mxu0 %v384
    %1086 = vmatpush.bf16.msra.mxu0 %v380
    %1087 = vmatmul.bf16.gmra.mxu0 %v1011
    %v1088 = vpop.f32.mrf.mxu0
    %v1089 = vadd.f32 %v1076, %v1088
    %v1090 = vpop.f32.mrf.mxu0
    %1091 = vdwg.mxu0
    %1092 = vmatpush.bf16.msra.mxu0 %v377
    %1093 = vmatpush.bf16.msra.mxu0 %v373
    %1094 = vmatpush.bf16.msra.mxu0 %v369
    %1095 = vmatpush.bf16.msra.mxu0 %v365
    %1096 = vmatpush.bf16.msra.mxu0 %v361
    %1097 = vmatpush.bf16.msra.mxu0 %v357
    %1098 = vmatpush.bf16.msra.mxu0 %v353
    %1099 = vmatpush.bf16.msra.mxu0 %v349
    %1100 = vmatmul.bf16.gmra.mxu0 %v1010
    %v1101 = vpop.f32.mrf.mxu0
    %v1102 = vadd.f32 %v135, %v1101
    %v1103 = vpop.f32.mrf.mxu0
    %1104 = vdwg.mxu0
    %1105 = vmatpush.bf16.msra.mxu0 %v409
    %1106 = vmatpush.bf16.msra.mxu0 %v405
    %1107 = vmatpush.bf16.msra.mxu0 %v401
    %1108 = vmatpush.bf16.msra.mxu0 %v397
    %1109 = vmatpush.bf16.msra.mxu0 %v393
    %1110 = vmatpush.bf16.msra.mxu0 %v389
    %1111 = vmatpush.bf16.msra.mxu0 %v385
    %1112 = vmatpush.bf16.msra.mxu0 %v381
    %1113 = vmatmul.bf16.gmra.mxu0 %v1011
    %v1114 = vpop.f32.mrf.mxu0
    %v1115 = vadd.f32 %v1102, %v1114
    %v1116 = vpop.f32.mrf.mxu0
    %1117 = vdwg.mxu0
    %v1118 = vxor.u32 %v1037, 2147483648
    %v1119 = vmul.f32 %v1118, 1.442695
    %v1120 = vpow.pop %v1119
    %v1121 = vadd.f32 %v1120, 1.0
    %v1122 = vrcp.pop %v1121
    %v1123 = vmul.f32 %v1121, %v1122
    %v1124 = vsub.f32 1.0, %v1123
    %v1125 = vmul.f32 %v1122, %v1124
    %v1126 = vadd.f32 %v1122, %v1125
    %vm1127 = vweird.f32 %v1121
    %vm1128 = vweird.f32 %v1122
    %vm1129 = vmor %vm1127, %vm1128
    %v1130 = vsel %vm1129, %v1122, %v1126
    %v1131 = vand.u32 2147483647, %v1121
    %vm1132 = vcmp.eq.f32.partialorder %v1131, 8.507059e+37
    %v1133 = vand.u32 %v1121, 2147483648
    %v1134 = vor.u32 1.1754944e-38, %v1133
    %v1135 = vsel %vm1132, %v1134, %v1130
    %v1136 = vmul.f32 1.0, %v1135
    %v1137 = vxor.u32 %v1063, 2147483648
    %v1138 = vmul.f32 %v1137, 1.442695
    %v1139 = vpow.pop %v1138
    %v1140 = vadd.f32 %v1139, 1.0
    %v1141 = vrcp.pop %v1140
    %v1142 = vmul.f32 %v1140, %v1141
    %v1143 = vsub.f32 1.0, %v1142
    %v1144 = vmul.f32 %v1141, %v1143
    %v1145 = vadd.f32 %v1141, %v1144
    %vm1146 = vweird.f32 %v1140
    %vm1147 = vweird.f32 %v1141
    %vm1148 = vmor %vm1146, %vm1147
    %v1149 = vsel %vm1148, %v1141, %v1145
    %v1150 = vand.u32 2147483647, %v1140
    %vm1151 = vcmp.eq.f32.partialorder %v1150, 8.507059e+37
    %v1152 = vand.u32 %v1140, 2147483648
    %v1153 = vor.u32 1.1754944e-38, %v1152
    %v1154 = vsel %vm1151, %v1153, %v1149
    %v1155 = vmul.f32 1.0, %v1154
    %v1156 = vtanh.pop %v1089
    %v1157 = vxor.u32 %v1115, 2147483648
    %v1158 = vmul.f32 %v1157, 1.442695
    %v1159 = vpow.pop %v1158
    %v1160 = vadd.f32 %v1159, 1.0
    %v1161 = vrcp.pop %v1160
    %v1162 = vmul.f32 %v1160, %v1161
    %v1163 = vsub.f32 1.0, %v1162
    %v1164 = vmul.f32 %v1161, %v1163
    %v1165 = vadd.f32 %v1161, %v1164
    %vm1166 = vweird.f32 %v1160
    %vm1167 = vweird.f32 %v1161
    %vm1168 = vmor %vm1166, %vm1167
    %v1169 = vsel %vm1168, %v1161, %v1165
    %v1170 = vand.u32 2147483647, %v1160
    %vm1171 = vcmp.eq.f32.partialorder %v1170, 8.507059e+37
    %v1172 = vand.u32 %v1160, 2147483648
    %v1173 = vor.u32 1.1754944e-38, %v1172
    %v1174 = vsel %vm1171, %v1173, %v1169
    %v1175 = vmul.f32 1.0, %v1174
    %v1176 = vmul.f32 %v1155, %v998
    %v1177 = vmul.f32 %v1136, %v1156
    %v1178 = vadd.f32 %v1176, %v1177
    %v1179 = vtanh.pop %v1178
    %v1180 = vmul.f32 %v1175, %v1179
    %s1181 = scalar_lea.vmem [#allocation5], 16
    %v1182 = vld [vmem:[%s1181] sm:$0xf]
    %1183 = vst [vmem:[#allocation4] sm:$0xf] %v1182
    %v1184 = vpack.c.bf16 %v1180, %v1180
    %1185 = vst [vmem:[#allocation4 + $0x4] sm:$0xf] %v1184
    %v1186 = vld [vmem:[#allocation4] sm:$0xff]
    %v1188 = vunpack.c.l.b16 %v1186
    %v1189 = vunpack.c.h.b16 %v1186
    %v1190 = vpack.c.b16 %v1188, %v1188
    %v1191 = vpack.c.b16 %v1189, %v1189
    %1194 = vmatpush.bf16.msra.mxu0 %v374
    %1195 = vmatpush.bf16.msra.mxu0 %v370
    %1196 = vmatpush.bf16.msra.mxu0 %v366
    %1197 = vmatpush.bf16.msra.mxu0 %v362
    %1198 = vmatpush.bf16.msra.mxu0 %v358
    %1199 = vmatpush.bf16.msra.mxu0 %v354
    %1200 = vmatpush.bf16.msra.mxu0 %v350
    %1201 = vmatpush.bf16.msra.mxu0 %v346
    %1202 = vmatmul.bf16.gmra.mxu0 %v1190
    %v1203 = vpop.f32.mrf.mxu0
    %v1204 = vadd.f32 %v132, %v1203
    %v1205 = vpop.f32.mrf.mxu0
    %1206 = vdwg.mxu0
    %1207 = vmatpush.bf16.msra.mxu0 %v406
    %1208 = vmatpush.bf16.msra.mxu0 %v402
    %1209 = vmatpush.bf16.msra.mxu0 %v398
    %1210 = vmatpush.bf16.msra.mxu0 %v394
    %1211 = vmatpush.bf16.msra.mxu0 %v390
    %1212 = vmatpush.bf16.msra.mxu0 %v386
    %1213 = vmatpush.bf16.msra.mxu0 %v382
    %1214 = vmatpush.bf16.msra.mxu0 %v378
    %1215 = vmatmul.bf16.gmra.mxu0 %v1191
    %v1216 = vpop.f32.mrf.mxu0
    %v1217 = vadd.f32 %v1204, %v1216
    %v1218 = vpop.f32.mrf.mxu0
    %1219 = vdwg.mxu0
    %1220 = vmatpush.bf16.msra.mxu0 %v375
    %1221 = vmatpush.bf16.msra.mxu0 %v371
    %1222 = vmatpush.bf16.msra.mxu0 %v367
    %1223 = vmatpush.bf16.msra.mxu0 %v363
    %1224 = vmatpush.bf16.msra.mxu0 %v359
    %1225 = vmatpush.bf16.msra.mxu0 %v355
    %1226 = vmatpush.bf16.msra.mxu0 %v351
    %1227 = vmatpush.bf16.msra.mxu0 %v347
    %1228 = vmatmul.bf16.gmra.mxu0 %v1190
    %v1229 = vpop.f32.mrf.mxu0
    %v1230 = vadd.f32 %v133, %v1229
    %v1231 = vpop.f32.mrf.mxu0
    %1232 = vdwg.mxu0
    %1233 = vmatpush.bf16.msra.mxu0 %v407
    %1234 = vmatpush.bf16.msra.mxu0 %v403
    %1235 = vmatpush.bf16.msra.mxu0 %v399
    %1236 = vmatpush.bf16.msra.mxu0 %v395
    %1237 = vmatpush.bf16.msra.mxu0 %v391
    %1238 = vmatpush.bf16.msra.mxu0 %v387
    %1239 = vmatpush.bf16.msra.mxu0 %v383
    %1240 = vmatpush.bf16.msra.mxu0 %v379
    %1241 = vmatmul.bf16.gmra.mxu0 %v1191
    %v1242 = vpop.f32.mrf.mxu0
    %v1243 = vadd.f32 %v1230, %v1242
    %v1244 = vpop.f32.mrf.mxu0
    %1245 = vdwg.mxu0
    %1246 = vmatpush.bf16.msra.mxu0 %v376
    %1247 = vmatpush.bf16.msra.mxu0 %v372
    %1248 = vmatpush.bf16.msra.mxu0 %v368
    %1249 = vmatpush.bf16.msra.mxu0 %v364
    %1250 = vmatpush.bf16.msra.mxu0 %v360
    %1251 = vmatpush.bf16.msra.mxu0 %v356
    %1252 = vmatpush.bf16.msra.mxu0 %v352
    %1253 = vmatpush.bf16.msra.mxu0 %v348
    %1254 = vmatmul.bf16.gmra.mxu0 %v1190
    %v1255 = vpop.f32.mrf.mxu0
    %v1256 = vadd.f32 %v134, %v1255
    %v1257 = vpop.f32.mrf.mxu0
    %1258 = vdwg.mxu0
    %1259 = vmatpush.bf16.msra.mxu0 %v408
    %1260 = vmatpush.bf16.msra.mxu0 %v404
    %1261 = vmatpush.bf16.msra.mxu0 %v400
    %1262 = vmatpush.bf16.msra.mxu0 %v396
    %1263 = vmatpush.bf16.msra.mxu0 %v392
    %1264 = vmatpush.bf16.msra.mxu0 %v388
    %1265 = vmatpush.bf16.msra.mxu0 %v384
    %1266 = vmatpush.bf16.msra.mxu0 %v380
    %1267 = vmatmul.bf16.gmra.mxu0 %v1191
    %v1268 = vpop.f32.mrf.mxu0
    %v1269 = vadd.f32 %v1256, %v1268
    %v1270 = vpop.f32.mrf.mxu0
    %1271 = vdwg.mxu0
    %1272 = vmatpush.bf16.msra.mxu0 %v377
    %1273 = vmatpush.bf16.msra.mxu0 %v373
    %1274 = vmatpush.bf16.msra.mxu0 %v369
    %1275 = vmatpush.bf16.msra.mxu0 %v365
    %1276 = vmatpush.bf16.msra.mxu0 %v361
    %1277 = vmatpush.bf16.msra.mxu0 %v357
    %1278 = vmatpush.bf16.msra.mxu0 %v353
    %1279 = vmatpush.bf16.msra.mxu0 %v349
    %1280 = vmatmul.bf16.gmra.mxu0 %v1190
    %v1281 = vpop.f32.mrf.mxu0
    %v1282 = vadd.f32 %v135, %v1281
    %v1283 = vpop.f32.mrf.mxu0
    %1284 = vdwg.mxu0
    %1285 = vmatpush.bf16.msra.mxu0 %v409
    %1286 = vmatpush.bf16.msra.mxu0 %v405
    %1287 = vmatpush.bf16.msra.mxu0 %v401
    %1288 = vmatpush.bf16.msra.mxu0 %v397
    %1289 = vmatpush.bf16.msra.mxu0 %v393
    %1290 = vmatpush.bf16.msra.mxu0 %v389
    %1291 = vmatpush.bf16.msra.mxu0 %v385
    %1292 = vmatpush.bf16.msra.mxu0 %v381
    %1293 = vmatmul.bf16.gmra.mxu0 %v1191
    %v1294 = vpop.f32.mrf.mxu0
    %v1295 = vadd.f32 %v1282, %v1294
    %v1296 = vpop.f32.mrf.mxu0
    %1297 = vdwg.mxu0
    %v1298 = vxor.u32 %v1217, 2147483648
    %v1299 = vmul.f32 %v1298, 1.442695
    %v1300 = vpow.pop %v1299
    %v1301 = vadd.f32 %v1300, 1.0
    %v1302 = vrcp.pop %v1301
    %v1303 = vmul.f32 %v1301, %v1302
    %v1304 = vsub.f32 1.0, %v1303
    %v1305 = vmul.f32 %v1302, %v1304
    %v1306 = vadd.f32 %v1302, %v1305
    %vm1307 = vweird.f32 %v1301
    %vm1308 = vweird.f32 %v1302
    %vm1309 = vmor %vm1307, %vm1308
    %v1310 = vsel %vm1309, %v1302, %v1306
    %v1311 = vand.u32 2147483647, %v1301
    %vm1312 = vcmp.eq.f32.partialorder %v1311, 8.507059e+37
    %v1313 = vand.u32 %v1301, 2147483648
    %v1314 = vor.u32 1.1754944e-38, %v1313
    %v1315 = vsel %vm1312, %v1314, %v1310
    %v1316 = vmul.f32 1.0, %v1315
    %v1317 = vxor.u32 %v1243, 2147483648
    %v1318 = vmul.f32 %v1317, 1.442695
    %v1319 = vpow.pop %v1318
    %v1320 = vadd.f32 %v1319, 1.0
    %v1321 = vrcp.pop %v1320
    %v1322 = vmul.f32 %v1320, %v1321
    %v1323 = vsub.f32 1.0, %v1322
    %v1324 = vmul.f32 %v1321, %v1323
    %v1325 = vadd.f32 %v1321, %v1324
    %vm1326 = vweird.f32 %v1320
    %vm1327 = vweird.f32 %v1321
    %vm1328 = vmor %vm1326, %vm1327
    %v1329 = vsel %vm1328, %v1321, %v1325
    %v1330 = vand.u32 2147483647, %v1320
    %vm1331 = vcmp.eq.f32.partialorder %v1330, 8.507059e+37
    %v1332 = vand.u32 %v1320, 2147483648
    %v1333 = vor.u32 1.1754944e-38, %v1332
    %v1334 = vsel %vm1331, %v1333, %v1329
    %v1335 = vmul.f32 1.0, %v1334
    %v1336 = vtanh.pop %v1269
    %v1337 = vxor.u32 %v1295, 2147483648
    %v1338 = vmul.f32 %v1337, 1.442695
    %v1339 = vpow.pop %v1338
    %v1340 = vadd.f32 %v1339, 1.0
    %v1341 = vrcp.pop %v1340
    %v1342 = vmul.f32 %v1340, %v1341
    %v1343 = vsub.f32 1.0, %v1342
    %v1344 = vmul.f32 %v1341, %v1343
    %v1345 = vadd.f32 %v1341, %v1344
    %vm1346 = vweird.f32 %v1340
    %vm1347 = vweird.f32 %v1341
    %vm1348 = vmor %vm1346, %vm1347
    %v1349 = vsel %vm1348, %v1341, %v1345
    %v1350 = vand.u32 2147483647, %v1340
    %vm1351 = vcmp.eq.f32.partialorder %v1350, 8.507059e+37
    %v1352 = vand.u32 %v1340, 2147483648
    %v1353 = vor.u32 1.1754944e-38, %v1352
    %v1354 = vsel %vm1351, %v1353, %v1349
    %v1355 = vmul.f32 1.0, %v1354
    %v1356 = vmul.f32 %v1335, %v1178
    %v1357 = vmul.f32 %v1316, %v1336
    %v1358 = vadd.f32 %v1356, %v1357
    %v1359 = vtanh.pop %v1358
    %v1360 = vmul.f32 %v1355, %v1359
    %s1361 = scalar_lea.vmem [#allocation5], 20
    %v1362 = vld [vmem:[%s1361] sm:$0xf]
    %1363 = vst [vmem:[#allocation4] sm:$0xf] %v1362
    %v1364 = vpack.c.bf16 %v1360, %v1360
    %1365 = vst [vmem:[#allocation4 + $0x4] sm:$0xf] %v1364
    %v1366 = vld [vmem:[#allocation4] sm:$0xff]
    %v1368 = vunpack.c.l.b16 %v1366
    %v1369 = vunpack.c.h.b16 %v1366
    %v1370 = vpack.c.b16 %v1368, %v1368
    %v1371 = vpack.c.b16 %v1369, %v1369
    %1374 = vmatpush.bf16.msra.mxu0 %v374
    %1375 = vmatpush.bf16.msra.mxu0 %v370
    %1376 = vmatpush.bf16.msra.mxu0 %v366
    %1377 = vmatpush.bf16.msra.mxu0 %v362
    %1378 = vmatpush.bf16.msra.mxu0 %v358
    %1379 = vmatpush.bf16.msra.mxu0 %v354
    %1380 = vmatpush.bf16.msra.mxu0 %v350
    %1381 = vmatpush.bf16.msra.mxu0 %v346
    %1382 = vmatmul.bf16.gmra.mxu0 %v1370
    %v1383 = vpop.f32.mrf.mxu0
    %v1384 = vadd.f32 %v132, %v1383
    %v1385 = vpop.f32.mrf.mxu0
    %1386 = vdwg.mxu0
    %1387 = vmatpush.bf16.msra.mxu0 %v406
    %1388 = vmatpush.bf16.msra.mxu0 %v402
    %1389 = vmatpush.bf16.msra.mxu0 %v398
    %1390 = vmatpush.bf16.msra.mxu0 %v394
    %1391 = vmatpush.bf16.msra.mxu0 %v390
    %1392 = vmatpush.bf16.msra.mxu0 %v386
    %1393 = vmatpush.bf16.msra.mxu0 %v382
    %1394 = vmatpush.bf16.msra.mxu0 %v378
    %1395 = vmatmul.bf16.gmra.mxu0 %v1371
    %v1396 = vpop.f32.mrf.mxu0
    %v1397 = vadd.f32 %v1384, %v1396
    %v1398 = vpop.f32.mrf.mxu0
    %1399 = vdwg.mxu0
    %1400 = vmatpush.bf16.msra.mxu0 %v375
    %1401 = vmatpush.bf16.msra.mxu0 %v371
    %1402 = vmatpush.bf16.msra.mxu0 %v367
    %1403 = vmatpush.bf16.msra.mxu0 %v363
    %1404 = vmatpush.bf16.msra.mxu0 %v359
    %1405 = vmatpush.bf16.msra.mxu0 %v355
    %1406 = vmatpush.bf16.msra.mxu0 %v351
    %1407 = vmatpush.bf16.msra.mxu0 %v347
    %1408 = vmatmul.bf16.gmra.mxu0 %v1370
    %v1409 = vpop.f32.mrf.mxu0
    %v1410 = vadd.f32 %v133, %v1409
    %v1411 = vpop.f32.mrf.mxu0
    %1412 = vdwg.mxu0
    %1413 = vmatpush.bf16.msra.mxu0 %v407
    %1414 = vmatpush.bf16.msra.mxu0 %v403
    %1415 = vmatpush.bf16.msra.mxu0 %v399
    %1416 = vmatpush.bf16.msra.mxu0 %v395
    %1417 = vmatpush.bf16.msra.mxu0 %v391
    %1418 = vmatpush.bf16.msra.mxu0 %v387
    %1419 = vmatpush.bf16.msra.mxu0 %v383
    %1420 = vmatpush.bf16.msra.mxu0 %v379
    %1421 = vmatmul.bf16.gmra.mxu0 %v1371
    %v1422 = vpop.f32.mrf.mxu0
    %v1423 = vadd.f32 %v1410, %v1422
    %v1424 = vpop.f32.mrf.mxu0
    %1425 = vdwg.mxu0
    %1426 = vmatpush.bf16.msra.mxu0 %v376
    %1427 = vmatpush.bf16.msra.mxu0 %v372
    %1428 = vmatpush.bf16.msra.mxu0 %v368
    %1429 = vmatpush.bf16.msra.mxu0 %v364
    %1430 = vmatpush.bf16.msra.mxu0 %v360
    %1431 = vmatpush.bf16.msra.mxu0 %v356
    %1432 = vmatpush.bf16.msra.mxu0 %v352
    %1433 = vmatpush.bf16.msra.mxu0 %v348
    %1434 = vmatmul.bf16.gmra.mxu0 %v1370
    %v1435 = vpop.f32.mrf.mxu0
    %v1436 = vadd.f32 %v134, %v1435
    %v1437 = vpop.f32.mrf.mxu0
    %1438 = vdwg.mxu0
    %1439 = vmatpush.bf16.msra.mxu0 %v408
    %1440 = vmatpush.bf16.msra.mxu0 %v404
    %1441 = vmatpush.bf16.msra.mxu0 %v400
    %1442 = vmatpush.bf16.msra.mxu0 %v396
    %1443 = vmatpush.bf16.msra.mxu0 %v392
    %1444 = vmatpush.bf16.msra.mxu0 %v388
    %1445 = vmatpush.bf16.msra.mxu0 %v384
    %1446 = vmatpush.bf16.msra.mxu0 %v380
    %1447 = vmatmul.bf16.gmra.mxu0 %v1371
    %v1448 = vpop.f32.mrf.mxu0
    %v1449 = vadd.f32 %v1436, %v1448
    %v1450 = vpop.f32.mrf.mxu0
    %1451 = vdwg.mxu0
    %1452 = vmatpush.bf16.msra.mxu0 %v377
    %1453 = vmatpush.bf16.msra.mxu0 %v373
    %1454 = vmatpush.bf16.msra.mxu0 %v369
    %1455 = vmatpush.bf16.msra.mxu0 %v365
    %1456 = vmatpush.bf16.msra.mxu0 %v361
    %1457 = vmatpush.bf16.msra.mxu0 %v357
    %1458 = vmatpush.bf16.msra.mxu0 %v353
    %1459 = vmatpush.bf16.msra.mxu0 %v349
    %1460 = vmatmul.bf16.gmra.mxu0 %v1370
    %v1461 = vpop.f32.mrf.mxu0
    %v1462 = vadd.f32 %v135, %v1461
    %v1463 = vpop.f32.mrf.mxu0
    %1464 = vdwg.mxu0
    %1465 = vmatpush.bf16.msra.mxu0 %v409
    %1466 = vmatpush.bf16.msra.mxu0 %v405
    %1467 = vmatpush.bf16.msra.mxu0 %v401
    %1468 = vmatpush.bf16.msra.mxu0 %v397
    %1469 = vmatpush.bf16.msra.mxu0 %v393
    %1470 = vmatpush.bf16.msra.mxu0 %v389
    %1471 = vmatpush.bf16.msra.mxu0 %v385
    %1472 = vmatpush.bf16.msra.mxu0 %v381
    %1473 = vmatmul.bf16.gmra.mxu0 %v1371
    %v1474 = vpop.f32.mrf.mxu0
    %v1475 = vadd.f32 %v1462, %v1474
    %v1476 = vpop.f32.mrf.mxu0
    %1477 = vdwg.mxu0
    %v1478 = vxor.u32 %v1397, 2147483648
    %v1479 = vmul.f32 %v1478, 1.442695
    %v1480 = vpow.pop %v1479
    %v1481 = vadd.f32 %v1480, 1.0
    %v1482 = vrcp.pop %v1481
    %v1483 = vmul.f32 %v1481, %v1482
    %v1484 = vsub.f32 1.0, %v1483
    %v1485 = vmul.f32 %v1482, %v1484
    %v1486 = vadd.f32 %v1482, %v1485
    %vm1487 = vweird.f32 %v1481
    %vm1488 = vweird.f32 %v1482
    %vm1489 = vmor %vm1487, %vm1488
    %v1490 = vsel %vm1489, %v1482, %v1486
    %v1491 = vand.u32 2147483647, %v1481
    %vm1492 = vcmp.eq.f32.partialorder %v1491, 8.507059e+37
    %v1493 = vand.u32 %v1481, 2147483648
    %v1494 = vor.u32 1.1754944e-38, %v1493
    %v1495 = vsel %vm1492, %v1494, %v1490
    %v1496 = vmul.f32 1.0, %v1495
    %v1497 = vxor.u32 %v1423, 2147483648
    %v1498 = vmul.f32 %v1497, 1.442695
    %v1499 = vpow.pop %v1498
    %v1500 = vadd.f32 %v1499, 1.0
    %v1501 = vrcp.pop %v1500
    %v1502 = vmul.f32 %v1500, %v1501
    %v1503 = vsub.f32 1.0, %v1502
    %v1504 = vmul.f32 %v1501, %v1503
    %v1505 = vadd.f32 %v1501, %v1504
    %vm1506 = vweird.f32 %v1500
    %vm1507 = vweird.f32 %v1501
    %vm1508 = vmor %vm1506, %vm1507
    %v1509 = vsel %vm1508, %v1501, %v1505
    %v1510 = vand.u32 2147483647, %v1500
    %vm1511 = vcmp.eq.f32.partialorder %v1510, 8.507059e+37
    %v1512 = vand.u32 %v1500, 2147483648
    %v1513 = vor.u32 1.1754944e-38, %v1512
    %v1514 = vsel %vm1511, %v1513, %v1509
    %v1515 = vmul.f32 1.0, %v1514
    %v1516 = vtanh.pop %v1449
    %v1517 = vxor.u32 %v1475, 2147483648
    %v1518 = vmul.f32 %v1517, 1.442695
    %v1519 = vpow.pop %v1518
    %v1520 = vadd.f32 %v1519, 1.0
    %v1521 = vrcp.pop %v1520
    %v1522 = vmul.f32 %v1520, %v1521
    %v1523 = vsub.f32 1.0, %v1522
    %v1524 = vmul.f32 %v1521, %v1523
    %v1525 = vadd.f32 %v1521, %v1524
    %vm1526 = vweird.f32 %v1520
    %vm1527 = vweird.f32 %v1521
    %vm1528 = vmor %vm1526, %vm1527
    %v1529 = vsel %vm1528, %v1521, %v1525
    %v1530 = vand.u32 2147483647, %v1520
    %vm1531 = vcmp.eq.f32.partialorder %v1530, 8.507059e+37
    %v1532 = vand.u32 %v1520, 2147483648
    %v1533 = vor.u32 1.1754944e-38, %v1532
    %v1534 = vsel %vm1531, %v1533, %v1529
    %v1535 = vmul.f32 1.0, %v1534
    %v1536 = vmul.f32 %v1515, %v1358
    %v1537 = vmul.f32 %v1496, %v1516
    %v1538 = vadd.f32 %v1536, %v1537
    %v1539 = vtanh.pop %v1538
    %v1540 = vmul.f32 %v1535, %v1539
    %s1541 = scalar_lea.vmem [#allocation5], 24
    %v1542 = vld [vmem:[%s1541] sm:$0xf]
    %1543 = vst [vmem:[#allocation4] sm:$0xf] %v1542
    %v1544 = vpack.c.bf16 %v1540, %v1540
    %1545 = vst [vmem:[#allocation4 + $0x4] sm:$0xf] %v1544
    %v1546 = vld [vmem:[#allocation4] sm:$0xff]
    %v1548 = vunpack.c.l.b16 %v1546
    %v1549 = vunpack.c.h.b16 %v1546
    %v1550 = vpack.c.b16 %v1548, %v1548
    %v1551 = vpack.c.b16 %v1549, %v1549
    %1554 = vmatpush.bf16.msra.mxu0 %v374
    %1555 = vmatpush.bf16.msra.mxu0 %v370
    %1556 = vmatpush.bf16.msra.mxu0 %v366
    %1557 = vmatpush.bf16.msra.mxu0 %v362
    %1558 = vmatpush.bf16.msra.mxu0 %v358
    %1559 = vmatpush.bf16.msra.mxu0 %v354
    %1560 = vmatpush.bf16.msra.mxu0 %v350
    %1561 = vmatpush.bf16.msra.mxu0 %v346
    %1562 = vmatmul.bf16.gmra.mxu0 %v1550
    %v1563 = vpop.f32.mrf.mxu0
    %v1564 = vadd.f32 %v132, %v1563
    %v1565 = vpop.f32.mrf.mxu0
    %1566 = vdwg.mxu0
    %1567 = vmatpush.bf16.msra.mxu0 %v406
    %1568 = vmatpush.bf16.msra.mxu0 %v402
    %1569 = vmatpush.bf16.msra.mxu0 %v398
    %1570 = vmatpush.bf16.msra.mxu0 %v394
    %1571 = vmatpush.bf16.msra.mxu0 %v390
    %1572 = vmatpush.bf16.msra.mxu0 %v386
    %1573 = vmatpush.bf16.msra.mxu0 %v382
    %1574 = vmatpush.bf16.msra.mxu0 %v378
    %1575 = vmatmul.bf16.gmra.mxu0 %v1551
    %v1576 = vpop.f32.mrf.mxu0
    %v1577 = vadd.f32 %v1564, %v1576
    %v1578 = vpop.f32.mrf.mxu0
    %1579 = vdwg.mxu0
    %1580 = vmatpush.bf16.msra.mxu0 %v375
    %1581 = vmatpush.bf16.msra.mxu0 %v371
    %1582 = vmatpush.bf16.msra.mxu0 %v367
    %1583 = vmatpush.bf16.msra.mxu0 %v363
    %1584 = vmatpush.bf16.msra.mxu0 %v359
    %1585 = vmatpush.bf16.msra.mxu0 %v355
    %1586 = vmatpush.bf16.msra.mxu0 %v351
    %1587 = vmatpush.bf16.msra.mxu0 %v347
    %1588 = vmatmul.bf16.gmra.mxu0 %v1550
    %v1589 = vpop.f32.mrf.mxu0
    %v1590 = vadd.f32 %v133, %v1589
    %v1591 = vpop.f32.mrf.mxu0
    %1592 = vdwg.mxu0
    %1593 = vmatpush.bf16.msra.mxu0 %v407
    %1594 = vmatpush.bf16.msra.mxu0 %v403
    %1595 = vmatpush.bf16.msra.mxu0 %v399
    %1596 = vmatpush.bf16.msra.mxu0 %v395
    %1597 = vmatpush.bf16.msra.mxu0 %v391
    %1598 = vmatpush.bf16.msra.mxu0 %v387
    %1599 = vmatpush.bf16.msra.mxu0 %v383
    %1600 = vmatpush.bf16.msra.mxu0 %v379
    %1601 = vmatmul.bf16.gmra.mxu0 %v1551
    %v1602 = vpop.f32.mrf.mxu0
    %v1603 = vadd.f32 %v1590, %v1602
    %v1604 = vpop.f32.mrf.mxu0
    %1605 = vdwg.mxu0
    %1606 = vmatpush.bf16.msra.mxu0 %v376
    %1607 = vmatpush.bf16.msra.mxu0 %v372
    %1608 = vmatpush.bf16.msra.mxu0 %v368
    %1609 = vmatpush.bf16.msra.mxu0 %v364
    %1610 = vmatpush.bf16.msra.mxu0 %v360
    %1611 = vmatpush.bf16.msra.mxu0 %v356
    %1612 = vmatpush.bf16.msra.mxu0 %v352
    %1613 = vmatpush.bf16.msra.mxu0 %v348
    %1614 = vmatmul.bf16.gmra.mxu0 %v1550
    %v1615 = vpop.f32.mrf.mxu0
    %v1616 = vadd.f32 %v134, %v1615
    %v1617 = vpop.f32.mrf.mxu0
    %1618 = vdwg.mxu0
    %1619 = vmatpush.bf16.msra.mxu0 %v408
    %1620 = vmatpush.bf16.msra.mxu0 %v404
    %1621 = vmatpush.bf16.msra.mxu0 %v400
    %1622 = vmatpush.bf16.msra.mxu0 %v396
    %1623 = vmatpush.bf16.msra.mxu0 %v392
    %1624 = vmatpush.bf16.msra.mxu0 %v388
    %1625 = vmatpush.bf16.msra.mxu0 %v384
    %1626 = vmatpush.bf16.msra.mxu0 %v380
    %1627 = vmatmul.bf16.gmra.mxu0 %v1551
    %v1628 = vpop.f32.mrf.mxu0
    %v1629 = vadd.f32 %v1616, %v1628
    %v1630 = vpop.f32.mrf.mxu0
    %1631 = vdwg.mxu0
    %1632 = vmatpush.bf16.msra.mxu0 %v377
    %1633 = vmatpush.bf16.msra.mxu0 %v373
    %1634 = vmatpush.bf16.msra.mxu0 %v369
    %1635 = vmatpush.bf16.msra.mxu0 %v365
    %1636 = vmatpush.bf16.msra.mxu0 %v361
    %1637 = vmatpush.bf16.msra.mxu0 %v357
    %1638 = vmatpush.bf16.msra.mxu0 %v353
    %1639 = vmatpush.bf16.msra.mxu0 %v349
    %1640 = vmatmul.bf16.gmra.mxu0 %v1550
    %v1641 = vpop.f32.mrf.mxu0
    %v1642 = vadd.f32 %v135, %v1641
    %v1643 = vpop.f32.mrf.mxu0
    %1644 = vdwg.mxu0
    %1645 = vmatpush.bf16.msra.mxu0 %v409
    %1646 = vmatpush.bf16.msra.mxu0 %v405
    %1647 = vmatpush.bf16.msra.mxu0 %v401
    %1648 = vmatpush.bf16.msra.mxu0 %v397
    %1649 = vmatpush.bf16.msra.mxu0 %v393
    %1650 = vmatpush.bf16.msra.mxu0 %v389
    %1651 = vmatpush.bf16.msra.mxu0 %v385
    %1652 = vmatpush.bf16.msra.mxu0 %v381
    %1653 = vmatmul.bf16.gmra.mxu0 %v1551
    %v1654 = vpop.f32.mrf.mxu0
    %v1655 = vadd.f32 %v1642, %v1654
    %v1656 = vpop.f32.mrf.mxu0
    %1657 = vdwg.mxu0
    %v1658 = vxor.u32 %v1577, 2147483648
    %v1659 = vmul.f32 %v1658, 1.442695
    %v1660 = vpow.pop %v1659
    %v1661 = vadd.f32 %v1660, 1.0
    %v1662 = vrcp.pop %v1661
    %v1663 = vmul.f32 %v1661, %v1662
    %v1664 = vsub.f32 1.0, %v1663
    %v1665 = vmul.f32 %v1662, %v1664
    %v1666 = vadd.f32 %v1662, %v1665
    %vm1667 = vweird.f32 %v1661
    %vm1668 = vweird.f32 %v1662
    %vm1669 = vmor %vm1667, %vm1668
    %v1670 = vsel %vm1669, %v1662, %v1666
    %v1671 = vand.u32 2147483647, %v1661
    %vm1672 = vcmp.eq.f32.partialorder %v1671, 8.507059e+37
    %v1673 = vand.u32 %v1661, 2147483648
    %v1674 = vor.u32 1.1754944e-38, %v1673
    %v1675 = vsel %vm1672, %v1674, %v1670
    %v1676 = vmul.f32 1.0, %v1675
    %v1677 = vxor.u32 %v1603, 2147483648
    %v1678 = vmul.f32 %v1677, 1.442695
    %v1679 = vpow.pop %v1678
    %v1680 = vadd.f32 %v1679, 1.0
    %v1681 = vrcp.pop %v1680
    %v1682 = vmul.f32 %v1680, %v1681
    %v1683 = vsub.f32 1.0, %v1682
    %v1684 = vmul.f32 %v1681, %v1683
    %v1685 = vadd.f32 %v1681, %v1684
    %vm1686 = vweird.f32 %v1680
    %vm1687 = vweird.f32 %v1681
    %vm1688 = vmor %vm1686, %vm1687
    %v1689 = vsel %vm1688, %v1681, %v1685
    %v1690 = vand.u32 2147483647, %v1680
    %vm1691 = vcmp.eq.f32.partialorder %v1690, 8.507059e+37
    %v1692 = vand.u32 %v1680, 2147483648
    %v1693 = vor.u32 1.1754944e-38, %v1692
    %v1694 = vsel %vm1691, %v1693, %v1689
    %v1695 = vmul.f32 1.0, %v1694
    %v1696 = vtanh.pop %v1629
    %v1697 = vxor.u32 %v1655, 2147483648
    %v1698 = vmul.f32 %v1697, 1.442695
    %v1699 = vpow.pop %v1698
    %v1700 = vadd.f32 %v1699, 1.0
    %v1701 = vrcp.pop %v1700
    %v1702 = vmul.f32 %v1700, %v1701
    %v1703 = vsub.f32 1.0, %v1702
    %v1704 = vmul.f32 %v1701, %v1703
    %v1705 = vadd.f32 %v1701, %v1704
    %vm1706 = vweird.f32 %v1700
    %vm1707 = vweird.f32 %v1701
    %vm1708 = vmor %vm1706, %vm1707
    %v1709 = vsel %vm1708, %v1701, %v1705
    %v1710 = vand.u32 2147483647, %v1700
    %vm1711 = vcmp.eq.f32.partialorder %v1710, 8.507059e+37
    %v1712 = vand.u32 %v1700, 2147483648
    %v1713 = vor.u32 1.1754944e-38, %v1712
    %v1714 = vsel %vm1711, %v1713, %v1709
    %v1715 = vmul.f32 1.0, %v1714
    %v1716 = vmul.f32 %v1695, %v1538
    %v1717 = vmul.f32 %v1676, %v1696
    %v1718 = vadd.f32 %v1716, %v1717
    %v1719 = vtanh.pop %v1718
    %v1720 = vmul.f32 %v1715, %v1719
    %s1721 = scalar_lea.vmem [#allocation5], 28
    %v1722 = vld [vmem:[%s1721] sm:$0xf]
    %1723 = vst [vmem:[#allocation4] sm:$0xf] %v1722
    %v1724 = vpack.c.bf16 %v1720, %v1720
    %1725 = vst [vmem:[#allocation4 + $0x4] sm:$0xf] %v1724
    %v1726 = vld [vmem:[#allocation4] sm:$0xff]
    %v1728 = vunpack.c.l.b16 %v1726
    %v1729 = vunpack.c.h.b16 %v1726
    %v1730 = vpack.c.b16 %v1728, %v1728
    %v1731 = vpack.c.b16 %v1729, %v1729
    %1734 = vmatpush.bf16.msra.mxu0 %v374
    %1735 = vmatpush.bf16.msra.mxu0 %v370
    %1736 = vmatpush.bf16.msra.mxu0 %v366
    %1737 = vmatpush.bf16.msra.mxu0 %v362
    %1738 = vmatpush.bf16.msra.mxu0 %v358
    %1739 = vmatpush.bf16.msra.mxu0 %v354
    %1740 = vmatpush.bf16.msra.mxu0 %v350
    %1741 = vmatpush.bf16.msra.mxu0 %v346
    %1742 = vmatmul.bf16.gmra.mxu0 %v1730
    %v1743 = vpop.f32.mrf.mxu0
    %v1744 = vadd.f32 %v132, %v1743
    %v1745 = vpop.f32.mrf.mxu0
    %1746 = vdwg.mxu0
    %1747 = vmatpush.bf16.msra.mxu0 %v406
    %1748 = vmatpush.bf16.msra.mxu0 %v402
    %1749 = vmatpush.bf16.msra.mxu0 %v398
    %1750 = vmatpush.bf16.msra.mxu0 %v394
    %1751 = vmatpush.bf16.msra.mxu0 %v390
    %1752 = vmatpush.bf16.msra.mxu0 %v386
    %1753 = vmatpush.bf16.msra.mxu0 %v382
    %1754 = vmatpush.bf16.msra.mxu0 %v378
    %1755 = vmatmul.bf16.gmra.mxu0 %v1731
    %v1756 = vpop.f32.mrf.mxu0
    %v1757 = vadd.f32 %v1744, %v1756
    %v1758 = vpop.f32.mrf.mxu0
    %1759 = vdwg.mxu0
    %1760 = vmatpush.bf16.msra.mxu0 %v375
    %1761 = vmatpush.bf16.msra.mxu0 %v371
    %1762 = vmatpush.bf16.msra.mxu0 %v367
    %1763 = vmatpush.bf16.msra.mxu0 %v363
    %1764 = vmatpush.bf16.msra.mxu0 %v359
    %1765 = vmatpush.bf16.msra.mxu0 %v355
    %1766 = vmatpush.bf16.msra.mxu0 %v351
    %1767 = vmatpush.bf16.msra.mxu0 %v347
    %1768 = vmatmul.bf16.gmra.mxu0 %v1730
    %v1769 = vpop.f32.mrf.mxu0
    %v1770 = vadd.f32 %v133, %v1769
    %v1771 = vpop.f32.mrf.mxu0
    %1772 = vdwg.mxu0
    %1773 = vmatpush.bf16.msra.mxu0 %v407
    %1774 = vmatpush.bf16.msra.mxu0 %v403
    %1775 = vmatpush.bf16.msra.mxu0 %v399
    %1776 = vmatpush.bf16.msra.mxu0 %v395
    %1777 = vmatpush.bf16.msra.mxu0 %v391
    %1778 = vmatpush.bf16.msra.mxu0 %v387
    %1779 = vmatpush.bf16.msra.mxu0 %v383
    %1780 = vmatpush.bf16.msra.mxu0 %v379
    %1781 = vmatmul.bf16.gmra.mxu0 %v1731
    %v1782 = vpop.f32.mrf.mxu0
    %v1783 = vadd.f32 %v1770, %v1782
    %v1784 = vpop.f32.mrf.mxu0
    %1785 = vdwg.mxu0
    %1786 = vmatpush.bf16.msra.mxu0 %v376
    %1787 = vmatpush.bf16.msra.mxu0 %v372
    %1788 = vmatpush.bf16.msra.mxu0 %v368
    %1789 = vmatpush.bf16.msra.mxu0 %v364
    %1790 = vmatpush.bf16.msra.mxu0 %v360
    %1791 = vmatpush.bf16.msra.mxu0 %v356
    %1792 = vmatpush.bf16.msra.mxu0 %v352
    %1793 = vmatpush.bf16.msra.mxu0 %v348
    %1794 = vmatmul.bf16.gmra.mxu0 %v1730
    %v1795 = vpop.f32.mrf.mxu0
    %v1796 = vadd.f32 %v134, %v1795
    %v1797 = vpop.f32.mrf.mxu0
    %1798 = vdwg.mxu0
    %1799 = vmatpush.bf16.msra.mxu0 %v408
    %1800 = vmatpush.bf16.msra.mxu0 %v404
    %1801 = vmatpush.bf16.msra.mxu0 %v400
    %1802 = vmatpush.bf16.msra.mxu0 %v396
    %1803 = vmatpush.bf16.msra.mxu0 %v392
    %1804 = vmatpush.bf16.msra.mxu0 %v388
    %1805 = vmatpush.bf16.msra.mxu0 %v384
    %1806 = vmatpush.bf16.msra.mxu0 %v380
    %1807 = vmatmul.bf16.gmra.mxu0 %v1731
    %v1808 = vpop.f32.mrf.mxu0
    %v1809 = vadd.f32 %v1796, %v1808
    %v1810 = vpop.f32.mrf.mxu0
    %1811 = vdwg.mxu0
    %1812 = vmatpush.bf16.msra.mxu0 %v377
    %1813 = vmatpush.bf16.msra.mxu0 %v373
    %1814 = vmatpush.bf16.msra.mxu0 %v369
    %1815 = vmatpush.bf16.msra.mxu0 %v365
    %1816 = vmatpush.bf16.msra.mxu0 %v361
    %1817 = vmatpush.bf16.msra.mxu0 %v357
    %1818 = vmatpush.bf16.msra.mxu0 %v353
    %1819 = vmatpush.bf16.msra.mxu0 %v349
    %1820 = vmatmul.bf16.gmra.mxu0 %v1730
    %v1821 = vpop.f32.mrf.mxu0
    %v1822 = vadd.f32 %v135, %v1821
    %v1823 = vpop.f32.mrf.mxu0
    %1824 = vdwg.mxu0
    %1825 = vmatpush.bf16.msra.mxu0 %v409
    %1826 = vmatpush.bf16.msra.mxu0 %v405
    %1827 = vmatpush.bf16.msra.mxu0 %v401
    %1828 = vmatpush.bf16.msra.mxu0 %v397
    %1829 = vmatpush.bf16.msra.mxu0 %v393
    %1830 = vmatpush.bf16.msra.mxu0 %v389
    %1831 = vmatpush.bf16.msra.mxu0 %v385
    %1832 = vmatpush.bf16.msra.mxu0 %v381
    %1833 = vmatmul.bf16.gmra.mxu0 %v1731
    %v1834 = vpop.f32.mrf.mxu0
    %v1835 = vadd.f32 %v1822, %v1834
    %v1836 = vpop.f32.mrf.mxu0
    %1837 = vdwg.mxu0
    %v1838 = vxor.u32 %v1757, 2147483648
    %v1839 = vmul.f32 %v1838, 1.442695
    %v1840 = vpow.pop %v1839
    %v1841 = vadd.f32 %v1840, 1.0
    %v1842 = vrcp.pop %v1841
    %v1843 = vmul.f32 %v1841, %v1842
    %v1844 = vsub.f32 1.0, %v1843
    %v1845 = vmul.f32 %v1842, %v1844
    %v1846 = vadd.f32 %v1842, %v1845
    %vm1847 = vweird.f32 %v1841
    %vm1848 = vweird.f32 %v1842
    %vm1849 = vmor %vm1847, %vm1848
    %v1850 = vsel %vm1849, %v1842, %v1846
    %v1851 = vand.u32 2147483647, %v1841
    %vm1852 = vcmp.eq.f32.partialorder %v1851, 8.507059e+37
    %v1853 = vand.u32 %v1841, 2147483648
    %v1854 = vor.u32 1.1754944e-38, %v1853
    %v1855 = vsel %vm1852, %v1854, %v1850
    %v1856 = vmul.f32 1.0, %v1855
    %v1857 = vxor.u32 %v1783, 2147483648
    %v1858 = vmul.f32 %v1857, 1.442695
    %v1859 = vpow.pop %v1858
    %v1860 = vadd.f32 %v1859, 1.0
    %v1861 = vrcp.pop %v1860
    %v1862 = vmul.f32 %v1860, %v1861
    %v1863 = vsub.f32 1.0, %v1862
    %v1864 = vmul.f32 %v1861, %v1863
    %v1865 = vadd.f32 %v1861, %v1864
    %vm1866 = vweird.f32 %v1860
    %vm1867 = vweird.f32 %v1861
    %vm1868 = vmor %vm1866, %vm1867
    %v1869 = vsel %vm1868, %v1861, %v1865
    %v1870 = vand.u32 2147483647, %v1860
    %vm1871 = vcmp.eq.f32.partialorder %v1870, 8.507059e+37
    %v1872 = vand.u32 %v1860, 2147483648
    %v1873 = vor.u32 1.1754944e-38, %v1872
    %v1874 = vsel %vm1871, %v1873, %v1869
    %v1875 = vmul.f32 1.0, %v1874
    %v1876 = vtanh.pop %v1809
    %v1877 = vxor.u32 %v1835, 2147483648
    %v1878 = vmul.f32 %v1877, 1.442695
    %v1879 = vpow.pop %v1878
    %v1880 = vadd.f32 %v1879, 1.0
    %v1881 = vrcp.pop %v1880
    %v1882 = vmul.f32 %v1880, %v1881
    %v1883 = vsub.f32 1.0, %v1882
    %v1884 = vmul.f32 %v1881, %v1883
    %v1885 = vadd.f32 %v1881, %v1884
    %vm1886 = vweird.f32 %v1880
    %vm1887 = vweird.f32 %v1881
    %vm1888 = vmor %vm1886, %vm1887
    %v1889 = vsel %vm1888, %v1881, %v1885
    %v1890 = vand.u32 2147483647, %v1880
    %vm1891 = vcmp.eq.f32.partialorder %v1890, 8.507059e+37
    %v1892 = vand.u32 %v1880, 2147483648
    %v1893 = vor.u32 1.1754944e-38, %v1892
    %v1894 = vsel %vm1891, %v1893, %v1889
    %v1895 = vmul.f32 1.0, %v1894
    %v1896 = vmul.f32 %v1875, %v1718
    %v1897 = vmul.f32 %v1856, %v1876
    %v1898 = vadd.f32 %v1896, %v1897
    %v1899 = vtanh.pop %v1898
    %v1900 = vmul.f32 %v1895, %v1899
    %1901 = vst [vmem:[#allocation2] sm:$0xff] %v1900
    %1902 = vst [vmem:[#allocation3] sm:$0xff] %v1898
    // Predicated region
    $region30: #{tpu_custom_call.1} parent=1 // pred_check
      %p1903 = pneg %p60
    $region31: #{tpu_custom_call.1} parent=1 // pred_check_branch
      %1905 = sbr.rel (%p1903) target = $region33
    $region32: #{tpu_custom_call.1} parent=1 // pred_region
      %1906 = vst [vmem:[#allocation11] sm:$0xff] %v1900
    $region33: #{tpu_custom_call.1} parent=1 // pred_fallthru
      _
    // Predicated region
    $region34: #{tpu_custom_call.1} parent=1 // pred_check
      _
    $region35: #{tpu_custom_call.1} parent=1 // pred_check_branch
      %1908 = sbr.rel (0) target = $region37
    $region36: #{tpu_custom_call.1} parent=1 // pred_region
      %1910 = vsyncadd [#allocation7], 0
      %s1912 = sshll.u32 [#allocation11], 4
      %s1913 = int_to_ptr.vmem [resolvable:$true] %s1912
      %s1914 = sshll.u32 %s3, 4
      %s1915 = int_to_ptr.hbm [resolvable:$true] %s1914
      %1917 = dma.vmem_to_hbm [thread:$0]  %s1913, 128, %s1915, [#allocation7]
    $region37: #{tpu_custom_call.1} parent=1 // pred_fallthru
      _
    // Predicated region
    $region38: #{tpu_custom_call.1} parent=1 // pred_check
      _
    $region39: #{tpu_custom_call.1} parent=1 // pred_check_branch
      %1919 = sbr.rel (0) target = $region41
    $region40: #{tpu_custom_call.1} parent=1 // pred_region
      %1921 = dma.done [#allocation7], 128
    $region41: #{tpu_custom_call.1} parent=1 // pred_fallthru
      _
    %1922 = vsyncpa [#allocation6], 1
    %1923 = vsyncpa [#allocation9], 1
    %1924 = vsyncpa [#allocation7], 1

</llo_original>
